<compile_context>
chip_gen: v7x
topology: tpu7x:2x2x1
jax: 0.10.0
libtpu: 0.0.40
codegen_flags: <defaults>
</compile_context>

<pallas_src>
import functools
import math

import jax
import jax.numpy as jnp
from jax.experimental import pallas as pl
from jax.experimental.pallas import tpu as pltpu

_GIN_EPS = 0.0   # GINConv default (train_eps=False)
_BN_EPS = 1e-5   # BatchNorm1d default
_LANES = 128     # all weights / activations are zero-padded to one lane tile

# Static row-block indices into the weight-matrix slab (each block is 128 rows).
(M_W1A, M_W1B, M_WQ1, M_WK1, M_WV1,
 M_W2A, M_W2B, M_WQ2, M_WK2, M_WV2) = range(10)
# Static row indices into the bias / BatchNorm-parameter slab.
(V_B1A, V_B1B, V_BN1G, V_BN1B, V_BQ1, V_BK1, V_BV1,
 V_B2A, V_B2B, V_BN2G, V_BN2B, V_BQ2, V_BK2, V_BV2) = range(14)
_NUM_VECS = 16  # 14 used rows, padded to a multiple of 8 sublanes


def _encoder_kernel(n, data_ref, wm_ref, wv_ref, o_ref):
    """Whole forward in one no-grid, fully VMEM-resident kernel.

    data_ref: (2n, 128)  rows [0:n)  = a_hat in cols [0:n), rows [n:2n) = x (padded)
    wm_ref:   (1280,128) ten 128x128 zero-padded weight matrices (already transposed)
    wv_ref:   (16, 128)  biases / BN gamma,beta as zero-padded rows
    o_ref:    (n, 128)   lane-dense output; valid data lives in cols [0:out2)
    """

    def mat(i):           # (128, 128) weight block — static offset, whole-tile load
        return wm_ref[pl.ds(i * _LANES, _LANES), :]

    def vec(i):           # (1, 128) bias / BN row — broadcasts against (n, 128)
        return wv_ref[pl.ds(i, 1), :]

    a_hat = data_ref[pl.ds(0, n), pl.ds(0, n)]          # (n, n)
    h = data_ref[pl.ds(n, n), :]                        # (n, 128) padded features

    def gin_relu(h, wi1, bi1, wi2, bi2):
        # GINConv: nn((1+eps)*h + sum_neighbors h_j) == nn(a_hat @ h), then outer ReLU.
        agg = jnp.dot(a_hat, h, preferred_element_type=jnp.float32)
        z = jnp.dot(agg, mat(wi1), preferred_element_type=jnp.float32) + vec(bi1)
        z = jnp.maximum(z, 0.0)                          # nn-internal ReLU
        z = jnp.dot(z, mat(wi2), preferred_element_type=jnp.float32) + vec(bi2)
        return jnp.maximum(z, 0.0)                       # F.relu after the conv

    def batch_norm(h, gi, bi):
        # Training-mode BatchNorm1d forward: per-feature batch stats, biased variance.
        # Zero-padded columns stay exactly zero (mean=0, (h-mean)=0, gamma/beta pad=0).
        mean = jnp.mean(h, axis=0, keepdims=True)
        var = jnp.mean(jnp.square(h - mean), axis=0, keepdims=True)
        return (h - mean) * jax.lax.rsqrt(var + _BN_EPS) * vec(gi) + vec(bi)

    def attention(h, qi, qb, ki, kb, vi, vb):
        # 1/sqrt(d) score scale is pre-folded into the Q weight/bias in pack_params.
        q = jnp.dot(h, mat(qi), preferred_element_type=jnp.float32) + vec(qb)
        k = jnp.dot(h, mat(ki), preferred_element_type=jnp.float32) + vec(kb)
        v = jnp.dot(h, mat(vi), preferred_element_type=jnp.float32) + vec(vb)
        # (n, n) scores: contract the padded feature axes directly (no k.T materialized;
        # zero padding columns contribute nothing to the dot).
        s = jax.lax.dot_general(q, k, (((1,), (1,)), ((), ())),
                                preferred_element_type=jnp.float32)
        s = s - jnp.max(s, axis=-1, keepdims=True)
        p = jnp.exp(s)
        p = p / jnp.sum(p, axis=-1, keepdims=True)       # exact divide (see header)
        return jnp.dot(p, v, preferred_element_type=jnp.float32)

    # Stage 1: conv1 -> ReLU -> bn1 -> attn1
    h = gin_relu(h, M_W1A, V_B1A, M_W1B, V_B1B)
    h = batch_norm(h, V_BN1G, V_BN1B)
    h = attention(h, M_WQ1, V_BQ1, M_WK1, V_BK1, M_WV1, V_BV1)
    # Stage 2: conv2 -> ReLU -> bn2 -> attn2
    h = gin_relu(h, M_W2A, V_B2A, M_W2B, V_B2B)
    h = batch_norm(h, V_BN2G, V_BN2B)
    h = attention(h, M_WQ2, V_BQ2, M_WK2, V_BK2, M_WV2, V_BV2)

    o_ref[...] = h.astype(o_ref.dtype)                   # lane-dense (n, 128) store


# ----------------------------------------------------------------------------------
# One-time preprocessing (hoisted out of the per-call path per the perf review).
# ----------------------------------------------------------------------------------
def pack_params(params):
    """Pack all PyTorch-layout weights into two VMEM slabs. Run ONCE per param set."""
    dim = params["nn1_w2"].shape[0]    # Linear(2*dim, dim) -> weight (dim, 2*dim)
    out2 = params["nn2_w2"].shape[0]   # Linear(2*dim, out2)
    num_features = params["nn1_w1"].shape[1]
    assert max(num_features, 2 * dim, dim, out2) <= _LANES, (
        "this packed kernel assumes every layer width fits one 128-lane tile")

    def padm(w):          # PyTorch (out, in) -> transposed (in, out), zero-pad to 128x128
        wt = jnp.asarray(w, jnp.float32).T
        return jnp.zeros((_LANES, _LANES), jnp.float32).at[:wt.shape[0], :wt.shape[1]].set(wt)

    def padv(b):          # (out,) -> zero-padded (128,)
        b = jnp.asarray(b, jnp.float32)
        return jnp.zeros((_LANES,), jnp.float32).at[:b.shape[0]].set(b)

    s1 = 1.0 / math.sqrt(float(dim))    # attn1 score scale (folded into Q)
    s2 = 1.0 / math.sqrt(float(out2))   # attn2 score scale (folded into Q)

    mats = [params["nn1_w1"], params["nn1_w2"],
            params["attn1_wq"] * s1, params["attn1_wk"], params["attn1_wv"],
            params["nn2_w1"], params["nn2_w2"],
            params["attn2_wq"] * s2, params["attn2_wk"], params["attn2_wv"]]
    vecs = [params["nn1_b1"], params["nn1_b2"], params["bn1_g"], params["bn1_b"],
            params["attn1_bq"] * s1, params["attn1_bk"], params["attn1_bv"],
            params["nn2_b1"], params["nn2_b2"], params["bn2_g"], params["bn2_b"],
            params["attn2_bq"] * s2, params["attn2_bk"], params["attn2_bv"]]

    wm = jnp.concatenate([padm(m) for m in mats], axis=0)          # (1280, 128)
    wv = jnp.stack([padv(v) for v in vecs], axis=0)                 # (14, 128)
    wv = jnp.concatenate(
        [wv, jnp.zeros((_NUM_VECS - wv.shape[0], _LANES), jnp.float32)], axis=0)
    return wm, wv, dim, out2


def pack_graph(x, edge_index):
    """Build the per-graph data slab: a_hat (message-passing operator) + padded x."""
    n, f = x.shape
    adj = jnp.zeros((n, n), jnp.float32).at[edge_index[1], edge_index[0]].add(1.0)
    a_hat = adj + (1.0 + _GIN_EPS) * jnp.eye(n, dtype=jnp.float32)
    data = jnp.zeros((2 * n, _LANES), jnp.float32)
    data = data.at[:n, :n].set(a_hat)
    data = data.at[n:, :f].set(x.astype(jnp.float32))
    return data


def encoder_forward(data, wm, wv, *, n, out2):
    """The jitted per-call path: one pallas_call (3 input DMAs) + a tiny output slice."""
    vmem = pl.BlockSpec(memory_space=pltpu.MemorySpace.VMEM)
    out = pl.pallas_call(
        functools.partial(_encoder_kernel, n),
        out_shape=jax.ShapeDtypeStruct((n, _LANES), jnp.float32),
        in_specs=[vmem, vmem, vmem],
        out_specs=vmem,
    )(data, wm, wv)
    return out[:, :out2]


def gin_node_weight_encoder(x, edge_index, params):
    """Convenience one-shot wrapper (packing + forward). Prefer packing once + reusing."""
    wm, wv, _, out2 = pack_params(params)
    data = pack_graph(x, edge_index)
    return encoder_forward(data, wm, wv, n=x.shape[0], out2=out2)


# ----------------------------------------------------------------------------------
# Pure-JAX reference mirroring the PyTorch forward (HIGHEST-precision matmuls).
# ----------------------------------------------------------------------------------
def _ref_forward(x, edge_index, p):
    hp = jax.lax.Precision.HIGHEST
    src, dst = edge_index[0], edge_index[1]

    def gin(h, w1, b1, w2, b2):
        agg = (1.0 + _GIN_EPS) * h + jnp.zeros_like(h).at[dst].add(h[src])
        z = jnp.maximum(jnp.matmul(agg, w1.T, precision=hp) + b1, 0.0)
        return jnp.matmul(z, w2.T, precision=hp) + b2

    def bn(h, g, b):
        m = h.mean(axis=0)
        v = jnp.square(h - m).mean(axis=0)
        return (h - m) / jnp.sqrt(v + _BN_EPS) * g + b

    def attn(h, wq, bq, wk, bk, wv, bv):
        d = h.shape[-1]
        q = jnp.matmul(h, wq.T, precision=hp) + bq
        k = jnp.matmul(h, wk.T, precision=hp) + bk
        v = jnp.matmul(h, wv.T, precision=hp) + bv
        s = jnp.matmul(q, k.T, precision=hp) / math.sqrt(d)
        pr = jax.nn.softmax(s, axis=-1)
        return jnp.matmul(pr, v, precision=hp).reshape(h.shape)

    h = jnp.maximum(gin(x, p["nn1_w1"], p["nn1_b1"], p["nn1_w2"], p["nn1_b2"]), 0.0)
    h = bn(h, p["bn1_g"], p["bn1_b"])
    h = attn(h, p["attn1_wq"], p["attn1_bq"], p["attn1_wk"], p["attn1_bk"],
             p["attn1_wv"], p["attn1_bv"])
    h = jnp.maximum(gin(h, p["nn2_w1"], p["nn2_b1"], p["nn2_w2"], p["nn2_b2"]), 0.0)
    h = bn(h, p["bn2_g"], p["bn2_b"])
    h = attn(h, p["attn2_wq"], p["attn2_bq"], p["attn2_wk"], p["attn2_bk"],
             p["attn2_wv"], p["attn2_bv"])
    return h


if __name__ == "__main__":
    N, NUM_FEATURES, DIM = 8, 16, 32
    OUT2 = 2  # add_mask=False branch

    key = jax.random.PRNGKey(0)
    kx, kp = jax.random.split(key)
    x = jax.random.normal(kx, (N, NUM_FEATURES), dtype=jnp.float32)

    # Small deterministic directed graph: bidirectional ring over the 8 nodes
    # (no self-loops, matching GINConv's convention).
    srcs = jnp.arange(N, dtype=jnp.int32)
    dsts = (srcs + 1) % N
    edge_index = jnp.stack([jnp.concatenate([srcs, dsts]),
                            jnp.concatenate([dsts, srcs])], axis=0)  # (2, 16)

    def linear(k, in_f, out_f):
        # nn.Linear default init: U(-1/sqrt(in), 1/sqrt(in)) for weight and bias.
        kw, kb = jax.random.split(k)
        bound = 1.0 / math.sqrt(in_f)
        w = jax.random.uniform(kw, (out_f, in_f), jnp.float32, -bound, bound)
        b = jax.random.uniform(kb, (out_f,), jnp.float32, -bound, bound)
        return w, b

    keys = jax.random.split(kp, 10)
    params = {}
    params["nn1_w1"], params["nn1_b1"] = linear(keys[0], NUM_FEATURES, 2 * DIM)
    params["nn1_w2"], params["nn1_b2"] = linear(keys[1], 2 * DIM, DIM)
    params["bn1_g"] = jnp.ones((DIM,), jnp.float32)
    params["bn1_b"] = jnp.zeros((DIM,), jnp.float32)
    params["attn1_wk"], params["attn1_bk"] = linear(keys[2], DIM, DIM)
    params["attn1_wq"], params["attn1_bq"] = linear(keys[3], DIM, DIM)
    params["attn1_wv"], params["attn1_bv"] = linear(keys[4], DIM, DIM)
    params["nn2_w1"], params["nn2_b1"] = linear(keys[5], DIM, 2 * DIM)
    params["nn2_w2"], params["nn2_b2"] = linear(keys[6], 2 * DIM, OUT2)
    params["bn2_g"] = jnp.ones((OUT2,), jnp.float32)
    params["bn2_b"] = jnp.zeros((OUT2,), jnp.float32)
    params["attn2_wk"], params["attn2_bk"] = linear(keys[7], OUT2, OUT2)
    params["attn2_wq"], params["attn2_bq"] = linear(keys[8], OUT2, OUT2)
    params["attn2_wv"], params["attn2_bv"] = linear(keys[9], OUT2, OUT2)
    # selfAttention.gamma parameters exist in the module but are unused in forward.

    # One-time preprocessing (hoisted out of the hot path), then the jitted forward.
    wm, wv, dim, out2 = pack_params(params)
    data = pack_graph(x, edge_index)
    fwd = jax.jit(functools.partial(encoder_forward, n=N, out2=out2))

    out = jax.block_until_ready(fwd(data, wm, wv))

    ref = _ref_forward(x, edge_index, params)
    assert out.shape == (N, OUT2)
    # Tolerance covers f32 MXU accumulation-order differences propagated through two
    # batch-norm normalizations.
    assert bool(jnp.allclose(out, ref, atol=2e-3, rtol=2e-3)), "mismatch vs reference"

    print("KERNEL_OK")
</pallas_src>

<mosaic_0001>
module attributes {stable_mosaic.version = 11 : i64} {
  func.func @_encoder_kernel(%arg0: memref<16x128xf32, #tpu.memory_space<vmem>>, %arg1: memref<1280x128xf32, #tpu.memory_space<vmem>>, %arg2: memref<16x128xf32, #tpu.memory_space<vmem>>, %arg3: memref<8x128xf32, #tpu.memory_space<vmem>>) attributes {dimension_semantics = [], scalar_prefetch = 0 : i64, scratch_operands = 0 : i64, tpu.core_type = #tpu.core_type<tc>} {
    %c0 = arith.constant 0 : index
    %c0_0 = arith.constant 0 : index
    %0 = vector.load %arg0[%c0, %c0_0] : memref<16x128xf32, #tpu.memory_space<vmem>>, vector<8x8xf32>
    %c8 = arith.constant 8 : index
    %c0_1 = arith.constant 0 : index
    %1 = vector.load %arg0[%c8, %c0_1] : memref<16x128xf32, #tpu.memory_space<vmem>>, vector<8x128xf32>
    %cst = arith.constant dense<0.000000e+00> : vector<8x128xf32>
    %2 = tpu.matmul %0, %1, %cst {dimension_numbers = #tpu.dot_dimension_numbers<[1], [0], [0], [1], [0, 0, 1, 1], [], []>} : vector<8x8xf32>, vector<8x128xf32>, vector<8x128xf32> -> vector<8x128xf32>
    %c0_2 = arith.constant 0 : index
    %c0_3 = arith.constant 0 : index
    %3 = vector.load %arg1[%c0_2, %c0_3] : memref<1280x128xf32, #tpu.memory_space<vmem>>, vector<128x128xf32>
    %cst_4 = arith.constant dense<0.000000e+00> : vector<8x128xf32>
    %4 = tpu.matmul %2, %3, %cst_4 {dimension_numbers = #tpu.dot_dimension_numbers<[1], [0], [0], [1], [0, 0, 1, 1], [], []>} : vector<8x128xf32>, vector<128x128xf32>, vector<8x128xf32> -> vector<8x128xf32>
    %c0_5 = arith.constant 0 : index
    %c0_6 = arith.constant 0 : index
    %5 = vector.load %arg2[%c0_5, %c0_6] : memref<16x128xf32, #tpu.memory_space<vmem>>, vector<1x128xf32>
    %6 = vector.broadcast %5 : vector<1x128xf32> to vector<8x128xf32>
    %7 = arith.addf %4, %6 : vector<8x128xf32>
    %cst_7 = arith.constant 0.000000e+00 : f32
    %8 = vector.broadcast %cst_7 : f32 to vector<8x128xf32>
    %9 = arith.maximumf %7, %8 : vector<8x128xf32>
    %c128 = arith.constant 128 : index
    %c0_8 = arith.constant 0 : index
    %10 = vector.load %arg1[%c128, %c0_8] : memref<1280x128xf32, #tpu.memory_space<vmem>>, vector<128x128xf32>
    %cst_9 = arith.constant dense<0.000000e+00> : vector<8x128xf32>
    %11 = tpu.matmul %9, %10, %cst_9 {dimension_numbers = #tpu.dot_dimension_numbers<[1], [0], [0], [1], [0, 0, 1, 1], [], []>} : vector<8x128xf32>, vector<128x128xf32>, vector<8x128xf32> -> vector<8x128xf32>
    %c1 = arith.constant 1 : index
    %c0_10 = arith.constant 0 : index
    %12 = vector.load %arg2[%c1, %c0_10] : memref<16x128xf32, #tpu.memory_space<vmem>>, vector<1x128xf32>
    %13 = vector.broadcast %12 : vector<1x128xf32> to vector<8x128xf32>
    %14 = arith.addf %11, %13 : vector<8x128xf32>
    %cst_11 = arith.constant 0.000000e+00 : f32
    %15 = vector.broadcast %cst_11 : f32 to vector<8x128xf32>
    %16 = arith.maximumf %14, %15 : vector<8x128xf32>
    %cst_12 = arith.constant dense<0.000000e+00> : vector<128xf32>
    %17 = vector.multi_reduction <add>, %16, %cst_12 [0] : vector<8x128xf32> to vector<128xf32>
    %18 = vector.shape_cast %17 : vector<128xf32> to vector<1x128xf32>
    %cst_13 = arith.constant 8.000000e+00 : f32
    %19 = vector.broadcast %cst_13 : f32 to vector<1x128xf32>
    %20 = arith.divf %18, %19 : vector<1x128xf32>
    %21 = vector.broadcast %20 : vector<1x128xf32> to vector<8x128xf32>
    %22 = arith.subf %16, %21 : vector<8x128xf32>
    %23 = arith.mulf %22, %22 : vector<8x128xf32>
    %cst_14 = arith.constant dense<0.000000e+00> : vector<128xf32>
    %24 = vector.multi_reduction <add>, %23, %cst_14 [0] : vector<8x128xf32> to vector<128xf32>
    %25 = vector.shape_cast %24 : vector<128xf32> to vector<1x128xf32>
    %cst_15 = arith.constant 8.000000e+00 : f32
    %26 = vector.broadcast %cst_15 : f32 to vector<1x128xf32>
    %27 = arith.divf %25, %26 : vector<1x128xf32>
    %28 = vector.broadcast %20 : vector<1x128xf32> to vector<8x128xf32>
    %29 = arith.subf %16, %28 : vector<8x128xf32>
    %cst_16 = arith.constant 9.99999974E-6 : f32
    %30 = vector.broadcast %cst_16 : f32 to vector<1x128xf32>
    %31 = arith.addf %27, %30 : vector<1x128xf32>
    %32 = math.rsqrt %31 : vector<1x128xf32>
    %33 = vector.broadcast %32 : vector<1x128xf32> to vector<8x128xf32>
    %34 = arith.mulf %29, %33 : vector<8x128xf32>
    %c2 = arith.constant 2 : index
    %c0_17 = arith.constant 0 : index
    %35 = vector.load %arg2[%c2, %c0_17] : memref<16x128xf32, #tpu.memory_space<vmem>>, vector<1x128xf32>
    %36 = vector.broadcast %35 : vector<1x128xf32> to vector<8x128xf32>
    %37 = arith.mulf %34, %36 : vector<8x128xf32>
    %c3 = arith.constant 3 : index
    %c0_18 = arith.constant 0 : index
    %38 = vector.load %arg2[%c3, %c0_18] : memref<16x128xf32, #tpu.memory_space<vmem>>, vector<1x128xf32>
    %39 = vector.broadcast %38 : vector<1x128xf32> to vector<8x128xf32>
    %40 = arith.addf %37, %39 : vector<8x128xf32>
    %c256 = arith.constant 256 : index
    %c0_19 = arith.constant 0 : index
    %41 = vector.load %arg1[%c256, %c0_19] : memref<1280x128xf32, #tpu.memory_space<vmem>>, vector<128x128xf32>
    %cst_20 = arith.constant dense<0.000000e+00> : vector<8x128xf32>
    %42 = tpu.matmul %40, %41, %cst_20 {dimension_numbers = #tpu.dot_dimension_numbers<[1], [0], [0], [1], [0, 0, 1, 1], [], []>} : vector<8x128xf32>, vector<128x128xf32>, vector<8x128xf32> -> vector<8x128xf32>
    %c4 = arith.constant 4 : index
    %c0_21 = arith.constant 0 : index
    %43 = vector.load %arg2[%c4, %c0_21] : memref<16x128xf32, #tpu.memory_space<vmem>>, vector<1x128xf32>
    %44 = vector.broadcast %43 : vector<1x128xf32> to vector<8x128xf32>
    %45 = arith.addf %42, %44 : vector<8x128xf32>
    %c384 = arith.constant 384 : index
    %c0_22 = arith.constant 0 : index
    %46 = vector.load %arg1[%c384, %c0_22] : memref<1280x128xf32, #tpu.memory_space<vmem>>, vector<128x128xf32>
    %cst_23 = arith.constant dense<0.000000e+00> : vector<8x128xf32>
    %47 = tpu.matmul %40, %46, %cst_23 {dimension_numbers = #tpu.dot_dimension_numbers<[1], [0], [0], [1], [0, 0, 1, 1], [], []>} : vector<8x128xf32>, vector<128x128xf32>, vector<8x128xf32> -> vector<8x128xf32>
    %c5 = arith.constant 5 : index
    %c0_24 = arith.constant 0 : index
    %48 = vector.load %arg2[%c5, %c0_24] : memref<16x128xf32, #tpu.memory_space<vmem>>, vector<1x128xf32>
    %49 = vector.broadcast %48 : vector<1x128xf32> to vector<8x128xf32>
    %50 = arith.addf %47, %49 : vector<8x128xf32>
    %c512 = arith.constant 512 : index
    %c0_25 = arith.constant 0 : index
    %51 = vector.load %arg1[%c512, %c0_25] : memref<1280x128xf32, #tpu.memory_space<vmem>>, vector<128x128xf32>
    %cst_26 = arith.constant dense<0.000000e+00> : vector<8x128xf32>
    %52 = tpu.matmul %40, %51, %cst_26 {dimension_numbers = #tpu.dot_dimension_numbers<[1], [0], [0], [1], [0, 0, 1, 1], [], []>} : vector<8x128xf32>, vector<128x128xf32>, vector<8x128xf32> -> vector<8x128xf32>
    %c6 = arith.constant 6 : index
    %c0_27 = arith.constant 0 : index
    %53 = vector.load %arg2[%c6, %c0_27] : memref<16x128xf32, #tpu.memory_space<vmem>>, vector<1x128xf32>
    %54 = vector.broadcast %53 : vector<1x128xf32> to vector<8x128xf32>
    %55 = arith.addf %52, %54 : vector<8x128xf32>
    %cst_28 = arith.constant dense<0.000000e+00> : vector<8x8xf32>
    %56 = tpu.matmul %45, %50, %cst_28 {dimension_numbers = #tpu.dot_dimension_numbers<[1], [1], [0], [0], [0, 0, 1, 0], [], []>} : vector<8x128xf32>, vector<8x128xf32>, vector<8x8xf32> -> vector<8x8xf32>
    %cst_29 = arith.constant dense<0xFF800000> : vector<8xf32>
    %57 = vector.multi_reduction <maximumf>, %56, %cst_29 [1] : vector<8x8xf32> to vector<8xf32>
    %58 = vector.shape_cast %57 : vector<8xf32> to vector<8x1xf32>
    %59 = vector.broadcast %58 : vector<8x1xf32> to vector<8x8xf32>
    %60 = arith.subf %56, %59 : vector<8x8xf32>
    %61 = math.exp %60 : vector<8x8xf32>
    %cst_30 = arith.constant dense<0.000000e+00> : vector<8xf32>
    %62 = vector.multi_reduction <add>, %61, %cst_30 [1] : vector<8x8xf32> to vector<8xf32>
    %63 = vector.shape_cast %62 : vector<8xf32> to vector<8x1xf32>
    %64 = vector.broadcast %63 : vector<8x1xf32> to vector<8x8xf32>
    %65 = arith.divf %61, %64 : vector<8x8xf32>
    %cst_31 = arith.constant dense<0.000000e+00> : vector<8x128xf32>
    %66 = tpu.matmul %65, %55, %cst_31 {dimension_numbers = #tpu.dot_dimension_numbers<[1], [0], [0], [1], [0, 0, 1, 1], [], []>} : vector<8x8xf32>, vector<8x128xf32>, vector<8x128xf32> -> vector<8x128xf32>
    %cst_32 = arith.constant dense<0.000000e+00> : vector<8x128xf32>
    %67 = tpu.matmul %0, %66, %cst_32 {dimension_numbers = #tpu.dot_dimension_numbers<[1], [0], [0], [1], [0, 0, 1, 1], [], []>} : vector<8x8xf32>, vector<8x128xf32>, vector<8x128xf32> -> vector<8x128xf32>
    %c640 = arith.constant 640 : index
    %c0_33 = arith.constant 0 : index
    %68 = vector.load %arg1[%c640, %c0_33] : memref<1280x128xf32, #tpu.memory_space<vmem>>, vector<128x128xf32>
    %cst_34 = arith.constant dense<0.000000e+00> : vector<8x128xf32>
    %69 = tpu.matmul %67, %68, %cst_34 {dimension_numbers = #tpu.dot_dimension_numbers<[1], [0], [0], [1], [0, 0, 1, 1], [], []>} : vector<8x128xf32>, vector<128x128xf32>, vector<8x128xf32> -> vector<8x128xf32>
    %c7 = arith.constant 7 : index
    %c0_35 = arith.constant 0 : index
    %70 = vector.load %arg2[%c7, %c0_35] : memref<16x128xf32, #tpu.memory_space<vmem>>, vector<1x128xf32>
    %71 = vector.broadcast %70 : vector<1x128xf32> to vector<8x128xf32>
    %72 = arith.addf %69, %71 : vector<8x128xf32>
    %cst_36 = arith.constant 0.000000e+00 : f32
    %73 = vector.broadcast %cst_36 : f32 to vector<8x128xf32>
    %74 = arith.maximumf %72, %73 : vector<8x128xf32>
    %c768 = arith.constant 768 : index
    %c0_37 = arith.constant 0 : index
    %75 = vector.load %arg1[%c768, %c0_37] : memref<1280x128xf32, #tpu.memory_space<vmem>>, vector<128x128xf32>
    %cst_38 = arith.constant dense<0.000000e+00> : vector<8x128xf32>
    %76 = tpu.matmul %74, %75, %cst_38 {dimension_numbers = #tpu.dot_dimension_numbers<[1], [0], [0], [1], [0, 0, 1, 1], [], []>} : vector<8x128xf32>, vector<128x128xf32>, vector<8x128xf32> -> vector<8x128xf32>
    %c8_39 = arith.constant 8 : index
    %c0_40 = arith.constant 0 : index
    %77 = vector.load %arg2[%c8_39, %c0_40] : memref<16x128xf32, #tpu.memory_space<vmem>>, vector<1x128xf32>
    %78 = vector.broadcast %77 : vector<1x128xf32> to vector<8x128xf32>
    %79 = arith.addf %76, %78 : vector<8x128xf32>
    %cst_41 = arith.constant 0.000000e+00 : f32
    %80 = vector.broadcast %cst_41 : f32 to vector<8x128xf32>
    %81 = arith.maximumf %79, %80 : vector<8x128xf32>
    %cst_42 = arith.constant dense<0.000000e+00> : vector<128xf32>
    %82 = vector.multi_reduction <add>, %81, %cst_42 [0] : vector<8x128xf32> to vector<128xf32>
    %83 = vector.shape_cast %82 : vector<128xf32> to vector<1x128xf32>
    %cst_43 = arith.constant 8.000000e+00 : f32
    %84 = vector.broadcast %cst_43 : f32 to vector<1x128xf32>
    %85 = arith.divf %83, %84 : vector<1x128xf32>
    %86 = vector.broadcast %85 : vector<1x128xf32> to vector<8x128xf32>
    %87 = arith.subf %81, %86 : vector<8x128xf32>
    %88 = arith.mulf %87, %87 : vector<8x128xf32>
    %cst_44 = arith.constant dense<0.000000e+00> : vector<128xf32>
    %89 = vector.multi_reduction <add>, %88, %cst_44 [0] : vector<8x128xf32> to vector<128xf32>
    %90 = vector.shape_cast %89 : vector<128xf32> to vector<1x128xf32>
    %cst_45 = arith.constant 8.000000e+00 : f32
    %91 = vector.broadcast %cst_45 : f32 to vector<1x128xf32>
    %92 = arith.divf %90, %91 : vector<1x128xf32>
    %93 = vector.broadcast %85 : vector<1x128xf32> to vector<8x128xf32>
    %94 = arith.subf %81, %93 : vector<8x128xf32>
    %cst_46 = arith.constant 9.99999974E-6 : f32
    %95 = vector.broadcast %cst_46 : f32 to vector<1x128xf32>
    %96 = arith.addf %92, %95 : vector<1x128xf32>
    %97 = math.rsqrt %96 : vector<1x128xf32>
    %98 = vector.broadcast %97 : vector<1x128xf32> to vector<8x128xf32>
    %99 = arith.mulf %94, %98 : vector<8x128xf32>
    %c9 = arith.constant 9 : index
    %c0_47 = arith.constant 0 : index
    %100 = vector.load %arg2[%c9, %c0_47] : memref<16x128xf32, #tpu.memory_space<vmem>>, vector<1x128xf32>
    %101 = vector.broadcast %100 : vector<1x128xf32> to vector<8x128xf32>
    %102 = arith.mulf %99, %101 : vector<8x128xf32>
    %c10 = arith.constant 10 : index
    %c0_48 = arith.constant 0 : index
    %103 = vector.load %arg2[%c10, %c0_48] : memref<16x128xf32, #tpu.memory_space<vmem>>, vector<1x128xf32>
    %104 = vector.broadcast %103 : vector<1x128xf32> to vector<8x128xf32>
    %105 = arith.addf %102, %104 : vector<8x128xf32>
    %c896 = arith.constant 896 : index
    %c0_49 = arith.constant 0 : index
    %106 = vector.load %arg1[%c896, %c0_49] : memref<1280x128xf32, #tpu.memory_space<vmem>>, vector<128x128xf32>
    %cst_50 = arith.constant dense<0.000000e+00> : vector<8x128xf32>
    %107 = tpu.matmul %105, %106, %cst_50 {dimension_numbers = #tpu.dot_dimension_numbers<[1], [0], [0], [1], [0, 0, 1, 1], [], []>} : vector<8x128xf32>, vector<128x128xf32>, vector<8x128xf32> -> vector<8x128xf32>
    %c11 = arith.constant 11 : index
    %c0_51 = arith.constant 0 : index
    %108 = vector.load %arg2[%c11, %c0_51] : memref<16x128xf32, #tpu.memory_space<vmem>>, vector<1x128xf32>
    %109 = vector.broadcast %108 : vector<1x128xf32> to vector<8x128xf32>
    %110 = arith.addf %107, %109 : vector<8x128xf32>
    %c1024 = arith.constant 1024 : index
    %c0_52 = arith.constant 0 : index
    %111 = vector.load %arg1[%c1024, %c0_52] : memref<1280x128xf32, #tpu.memory_space<vmem>>, vector<128x128xf32>
    %cst_53 = arith.constant dense<0.000000e+00> : vector<8x128xf32>
    %112 = tpu.matmul %105, %111, %cst_53 {dimension_numbers = #tpu.dot_dimension_numbers<[1], [0], [0], [1], [0, 0, 1, 1], [], []>} : vector<8x128xf32>, vector<128x128xf32>, vector<8x128xf32> -> vector<8x128xf32>
    %c12 = arith.constant 12 : index
    %c0_54 = arith.constant 0 : index
    %113 = vector.load %arg2[%c12, %c0_54] : memref<16x128xf32, #tpu.memory_space<vmem>>, vector<1x128xf32>
    %114 = vector.broadcast %113 : vector<1x128xf32> to vector<8x128xf32>
    %115 = arith.addf %112, %114 : vector<8x128xf32>
    %c1152 = arith.constant 1152 : index
    %c0_55 = arith.constant 0 : index
    %116 = vector.load %arg1[%c1152, %c0_55] : memref<1280x128xf32, #tpu.memory_space<vmem>>, vector<128x128xf32>
    %cst_56 = arith.constant dense<0.000000e+00> : vector<8x128xf32>
    %117 = tpu.matmul %105, %116, %cst_56 {dimension_numbers = #tpu.dot_dimension_numbers<[1], [0], [0], [1], [0, 0, 1, 1], [], []>} : vector<8x128xf32>, vector<128x128xf32>, vector<8x128xf32> -> vector<8x128xf32>
    %c13 = arith.constant 13 : index
    %c0_57 = arith.constant 0 : index
    %118 = vector.load %arg2[%c13, %c0_57] : memref<16x128xf32, #tpu.memory_space<vmem>>, vector<1x128xf32>
    %119 = vector.broadcast %118 : vector<1x128xf32> to vector<8x128xf32>
    %120 = arith.addf %117, %119 : vector<8x128xf32>
    %cst_58 = arith.constant dense<0.000000e+00> : vector<8x8xf32>
    %121 = tpu.matmul %110, %115, %cst_58 {dimension_numbers = #tpu.dot_dimension_numbers<[1], [1], [0], [0], [0, 0, 1, 0], [], []>} : vector<8x128xf32>, vector<8x128xf32>, vector<8x8xf32> -> vector<8x8xf32>
    %cst_59 = arith.constant dense<0xFF800000> : vector<8xf32>
    %122 = vector.multi_reduction <maximumf>, %121, %cst_59 [1] : vector<8x8xf32> to vector<8xf32>
    %123 = vector.shape_cast %122 : vector<8xf32> to vector<8x1xf32>
    %124 = vector.broadcast %123 : vector<8x1xf32> to vector<8x8xf32>
    %125 = arith.subf %121, %124 : vector<8x8xf32>
    %126 = math.exp %125 : vector<8x8xf32>
    %cst_60 = arith.constant dense<0.000000e+00> : vector<8xf32>
    %127 = vector.multi_reduction <add>, %126, %cst_60 [1] : vector<8x8xf32> to vector<8xf32>
    %128 = vector.shape_cast %127 : vector<8xf32> to vector<8x1xf32>
    %129 = vector.broadcast %128 : vector<8x1xf32> to vector<8x8xf32>
    %130 = arith.divf %126, %129 : vector<8x8xf32>
    %cst_61 = arith.constant dense<0.000000e+00> : vector<8x128xf32>
    %131 = tpu.matmul %130, %120, %cst_61 {dimension_numbers = #tpu.dot_dimension_numbers<[1], [0], [0], [1], [0, 0, 1, 1], [], []>} : vector<8x8xf32>, vector<8x128xf32>, vector<8x128xf32> -> vector<8x128xf32>
    %c0_62 = arith.constant 0 : index
    %c0_63 = arith.constant 0 : index
    %132 = vector.load %arg3[%c0_62, %c0_63] : memref<8x128xf32, #tpu.memory_space<vmem>>, vector<8x128xf32>
    tpu.vector_store %arg3[%c0_62, %c0_63], %131 {strides = array<i32>} : memref<8x128xf32, #tpu.memory_space<vmem>>, vector<8x128xf32>,
    return
  }
}

</mosaic_0001>

<llo_original>
// kernel: encoder_forward.1
$region0: #{encoder_forward.1}
  #allocation0 [shape = 'u32[]', space=smem, size = 0x4, offset = 0x4, fixed_abs, tag = 'smem constant byte address 0x4 - core index']
  #allocation1 [shape = 'u32[144,128]{1,0:T(1,128)}', space=vmem, size = 0x12000, scoped, tag = 'internal scratch']
  %s0 = inlined_call_operand.hbm [shape: f32[16,128], index: 0, kind: input, shape index: {}]
  %s1 = inlined_call_operand.hbm [shape: f32[1280,128], index: 1, kind: input, shape index: {}]
  %s2 = inlined_call_operand.hbm [shape: f32[16,128], index: 2, kind: input, shape index: {}]
  %s3 = inlined_call_operand.vmem [shape: f32[8,128], index: 3, kind: output, shape index: {}]
  %s4 = sld [smem:[#allocation0]]
  $region34: #{encoder_forward.1} parent=0
    _
  %s6 = ssub.s32 1, %s4
  %s7 = scalar_select 0, %s6, %s4
  $region1: #{encoder_forward.1} parent=0
    #allocation2 [shape = 'u8[8192]{0}', space=vmem, size = 0x2000, scoped, tag = 'input window, operand 0, single buffered']
    #allocation3 [shape = 's32[1]{0}', space=sflag, size = 0x4, scoped, tag = 'scoped memory for encoder_forward.1']
    #allocation4 [shape = 'u8[655360]{0}', space=vmem, size = 0xa0000, scoped, tag = 'input window, operand 1, single buffered']
    #allocation5 [shape = 's32[1]{0}', space=sflag, size = 0x4, scoped, tag = 'scoped memory for encoder_forward.1']
    #allocation6 [shape = 'u8[8192]{0}', space=vmem, size = 0x2000, scoped, tag = 'input window, operand 2, single buffered']
    %8 = vsyncpa [#allocation3], 0
    %9 = vsyncpa [#allocation5], 0
    // Predicated region
    $region2: #{encoder_forward.1} parent=1 // pred_check
      _
    $region3: #{encoder_forward.1} parent=1 // pred_check_branch
      %11 = sbr.rel (0) target = $region5
    $region4: #{encoder_forward.1} parent=1 // pred_region
      %s13 = ssub.s32 256, 256
      %14 = vsyncadd [#allocation3], %s13
      %s15 = sshll.u32 [#allocation2], 4
      %s16 = int_to_ptr.vmem [resolvable:$true] %s15
      %21 = dma.hbm_to_vmem [thread:$0]  %s0, 256, %s16, [#allocation3], 128, 128, 8
    $region5: #{encoder_forward.1} parent=1 // pred_fallthru
      _
    // Predicated region
    $region6: #{encoder_forward.1} parent=1 // pred_check
      _
    $region7: #{encoder_forward.1} parent=1 // pred_check_branch
      %23 = sbr.rel (0) target = $region9
    $region8: #{encoder_forward.1} parent=1 // pred_region
      %s25 = ssub.s32 20480, 20480
      %26 = vsyncadd [#allocation5], %s25
      %s27 = sshll.u32 [#allocation4], 4
      %s28 = int_to_ptr.vmem [resolvable:$true] %s27
      %33 = dma.hbm_to_vmem [thread:$0]  %s1, 20480, %s28, [#allocation5], 128, 128, 8
    $region9: #{encoder_forward.1} parent=1 // pred_fallthru
      _
    // Predicated region
    $region10: #{encoder_forward.1} parent=1 // pred_check
      _
    $region11: #{encoder_forward.1} parent=1 // pred_check_branch
      %35 = sbr.rel (0) target = $region13
    $region12: #{encoder_forward.1} parent=1 // pred_region
      %s37 = ssub.s32 256, 256
      %38 = vsyncadd [#allocation5], %s37
      %s39 = sshll.u32 [#allocation6], 4
      %s40 = int_to_ptr.vmem [resolvable:$true] %s39
      %45 = dma.hbm_to_vmem [thread:$0]  %s2, 256, %s40, [#allocation5], 128, 128, 8
    $region13: #{encoder_forward.1} parent=1 // pred_fallthru
      _
    // Predicated region
    $region14: #{encoder_forward.1} parent=1 // pred_check
      _
    $region15: #{encoder_forward.1} parent=1 // pred_check_branch
      %47 = sbr.rel (0) target = $region17
    $region16: #{encoder_forward.1} parent=1 // pred_region
      %48 = dma.done [#allocation3], 256
    $region17: #{encoder_forward.1} parent=1 // pred_fallthru
      _
    // Predicated region
    $region18: #{encoder_forward.1} parent=1 // pred_check
      _
    $region19: #{encoder_forward.1} parent=1 // pred_check_branch
      %50 = sbr.rel (0) target = $region21
    $region20: #{encoder_forward.1} parent=1 // pred_region
      %51 = dma.done [#allocation5], 20480
    $region21: #{encoder_forward.1} parent=1 // pred_fallthru
      _
    // Predicated region
    $region22: #{encoder_forward.1} parent=1 // pred_check
      _
    $region23: #{encoder_forward.1} parent=1 // pred_check_branch
      %53 = sbr.rel (0) target = $region25
    $region24: #{encoder_forward.1} parent=1 // pred_region
      %54 = dma.done [#allocation5], 256
    $region25: #{encoder_forward.1} parent=1 // pred_fallthru
      _
    %v55 = vld [vmem:[#allocation2] sm:$0xff]
    %v56 = vld [vmem:[#allocation2 + $0x8] sm:$0xff]
    %vm57 = vcmask 64512
    %v59 = vsel %vm57, %v55, 0
    %61 = vmatprep.subr.mxu0 0.0
    %62 = vmatpush1.msra.mxu0 %v56
    %63 = vmatprep.subr.mxu0 0.0
    %64 = vmatpush1.msra.mxu0 0.0
    %65 = vmatprep.subr.mxu0 0.0
    %66 = vmatpush1.msra.mxu0 0.0
    %67 = vmatprep.subr.mxu0 0.0
    %68 = vmatpush1.msra.mxu0 0.0
    %69 = vmatprep.subr.mxu0 0.0
    %70 = vmatpush1.msra.mxu0 0.0
    %71 = vmatprep.subr.mxu0 0.0
    %72 = vmatpush1.msra.mxu0 0.0
    %73 = vmatprep.subr.mxu0 0.0
    %74 = vmatpush1.msra.mxu0 0.0
    %75 = vmatprep.subr.mxu0 0.0
    %76 = vmatpush1.msra.mxu0 0.0
    %77 = vmatprep.subr.mxu0 0.0
    %78 = vmatpush1.msra.mxu0 0.0
    %79 = vmatprep.subr.mxu0 0.0
    %80 = vmatpush1.msra.mxu0 0.0
    %81 = vmatprep.subr.mxu0 0.0
    %82 = vmatpush1.msra.mxu0 0.0
    %83 = vmatprep.subr.mxu0 0.0
    %84 = vmatpush1.msra.mxu0 0.0
    %85 = vmatprep.subr.mxu0 0.0
    %86 = vmatpush1.msra.mxu0 0.0
    %87 = vmatprep.subr.mxu0 0.0
    %88 = vmatpush1.msra.mxu0 0.0
    %89 = vmatprep.subr.mxu0 0.0
    %90 = vmatpush1.msra.mxu0 0.0
    %91 = vmatprep.subr.mxu0 0.0
    %92 = vmatpush1.msra.mxu0 0.0
    %93 = vmatprep.subr.mxu0 0.0
    %94 = vmatpush1.msra.mxu0 0.0
    %95 = vmatprep.subr.mxu0 0.0
    %96 = vmatpush1.msra.mxu0 0.0
    %97 = vmatprep.subr.mxu0 0.0
    %98 = vmatpush1.msra.mxu0 0.0
    %99 = vmatprep.subr.mxu0 0.0
    %100 = vmatpush1.msra.mxu0 0.0
    %101 = vmatprep.subr.mxu0 0.0
    %102 = vmatpush1.msra.mxu0 0.0
    %103 = vmatprep.subr.mxu0 0.0
    %104 = vmatpush1.msra.mxu0 0.0
    %105 = vmatprep.subr.mxu0 0.0
    %106 = vmatpush1.msra.mxu0 0.0
    %107 = vmatprep.subr.mxu0 0.0
    %108 = vmatpush1.msra.mxu0 0.0
    %109 = vmatprep.subr.mxu0 0.0
    %110 = vmatpush1.msra.mxu0 0.0
    %111 = vmatprep.subr.mxu0 0.0
    %112 = vmatpush1.msra.mxu0 0.0
    %113 = vmatprep.subr.mxu0 0.0
    %114 = vmatpush1.msra.mxu0 0.0
    %115 = vmatprep.subr.mxu0 0.0
    %116 = vmatpush1.msra.mxu0 0.0
    %117 = vmatprep.subr.mxu0 0.0
    %118 = vmatpush1.msra.mxu0 0.0
    %119 = vmatprep.subr.mxu0 0.0
    %120 = vmatpush1.msra.mxu0 0.0
    %121 = vmatprep.subr.mxu0 0.0
    %122 = vmatpush1.msra.mxu0 0.0
    %123 = vmatprep.subr.mxu0 0.0
    %124 = vmatpush1.msra.mxu0 0.0
    %125 = vmatprep.mubr.f32.mxu0 0.0
    %126 = vmatmul.mubr.f32.gmra.mrb[0].mxu0 %v59
    %v127 = vpop.f32.mrb[0].mxu0
    %v128 = vadd.f32 0.0, %v127
    %v129 = vpop.f32.mrb[0].mxu0
    %130 = vdwg.mxu0
    %v131 = vld [vmem:[#allocation4] sm:$0xff]
    %v132 = vld [vmem:[#allocation4 + $0x8] sm:$0xff]
    %v133 = vld [vmem:[#allocation4 + $0x10] sm:$0xff]
    %v134 = vld [vmem:[#allocation4 + $0x18] sm:$0xff]
    %v135 = vld [vmem:[#allocation4 + $0x20] sm:$0xff]
    %v136 = vld [vmem:[#allocation4 + $0x28] sm:$0xff]
    %v137 = vld [vmem:[#allocation4 + $0x30] sm:$0xff]
    %v138 = vld [vmem:[#allocation4 + $0x38] sm:$0xff]
    %v139 = vld [vmem:[#allocation4 + $0x40] sm:$0xff]
    %v140 = vld [vmem:[#allocation4 + $0x48] sm:$0xff]
    %v141 = vld [vmem:[#allocation4 + $0x50] sm:$0xff]
    %v142 = vld [vmem:[#allocation4 + $0x58] sm:$0xff]
    %v143 = vld [vmem:[#allocation4 + $0x60] sm:$0xff]
    %v144 = vld [vmem:[#allocation4 + $0x68] sm:$0xff]
    %v145 = vld [vmem:[#allocation4 + $0x70] sm:$0xff]
    %v146 = vld [vmem:[#allocation4 + $0x78] sm:$0xff]
    %v147 = vld [vmem:[#allocation6] sm:$0x1]
    %v148 = vlaneseq
    %v149 = vshrl.u32 %v148, 7
    %v150 = vsub.s32 0, %v149
    %v151 = vrot.slane %v147, %v150
    %152 = vmatprep.subr.mxu0 0.0
    %153 = vmatpush1.msra.mxu0 %v131
    %154 = vmatprep.subr.mxu0 0.0
    %155 = vmatpush1.msra.mxu0 %v132
    %156 = vmatprep.subr.mxu0 0.0
    %157 = vmatpush1.msra.mxu0 %v133
    %158 = vmatprep.subr.mxu0 0.0
    %159 = vmatpush1.msra.mxu0 %v134
    %160 = vmatprep.subr.mxu0 0.0
    %161 = vmatpush1.msra.mxu0 %v135
    %162 = vmatprep.subr.mxu0 0.0
    %163 = vmatpush1.msra.mxu0 %v136
    %164 = vmatprep.subr.mxu0 0.0
    %165 = vmatpush1.msra.mxu0 %v137
    %166 = vmatprep.subr.mxu0 0.0
    %167 = vmatpush1.msra.mxu0 %v138
    %168 = vmatprep.subr.mxu0 0.0
    %169 = vmatpush1.msra.mxu0 %v139
    %170 = vmatprep.subr.mxu0 0.0
    %171 = vmatpush1.msra.mxu0 %v140
    %172 = vmatprep.subr.mxu0 0.0
    %173 = vmatpush1.msra.mxu0 %v141
    %174 = vmatprep.subr.mxu0 0.0
    %175 = vmatpush1.msra.mxu0 %v142
    %176 = vmatprep.subr.mxu0 0.0
    %177 = vmatpush1.msra.mxu0 %v143
    %178 = vmatprep.subr.mxu0 0.0
    %179 = vmatpush1.msra.mxu0 %v144
    %180 = vmatprep.subr.mxu0 0.0
    %181 = vmatpush1.msra.mxu0 %v145
    %182 = vmatprep.subr.mxu0 0.0
    %183 = vmatpush1.msra.mxu0 %v146
    %184 = vmatprep.subr.mxu0 0.0
    %185 = vmatpush1.msra.mxu0 0.0
    %186 = vmatprep.subr.mxu0 0.0
    %187 = vmatpush1.msra.mxu0 0.0
    %188 = vmatprep.subr.mxu0 0.0
    %189 = vmatpush1.msra.mxu0 0.0
    %190 = vmatprep.subr.mxu0 0.0
    %191 = vmatpush1.msra.mxu0 0.0
    %192 = vmatprep.subr.mxu0 0.0
    %193 = vmatpush1.msra.mxu0 0.0
    %194 = vmatprep.subr.mxu0 0.0
    %195 = vmatpush1.msra.mxu0 0.0
    %196 = vmatprep.subr.mxu0 0.0
    %197 = vmatpush1.msra.mxu0 0.0
    %198 = vmatprep.subr.mxu0 0.0
    %199 = vmatpush1.msra.mxu0 0.0
    %200 = vmatprep.subr.mxu0 0.0
    %201 = vmatpush1.msra.mxu0 0.0
    %202 = vmatprep.subr.mxu0 0.0
    %203 = vmatpush1.msra.mxu0 0.0
    %204 = vmatprep.subr.mxu0 0.0
    %205 = vmatpush1.msra.mxu0 0.0
    %206 = vmatprep.subr.mxu0 0.0
    %207 = vmatpush1.msra.mxu0 0.0
    %208 = vmatprep.subr.mxu0 0.0
    %209 = vmatpush1.msra.mxu0 0.0
    %210 = vmatprep.subr.mxu0 0.0
    %211 = vmatpush1.msra.mxu0 0.0
    %212 = vmatprep.subr.mxu0 0.0
    %213 = vmatpush1.msra.mxu0 0.0
    %214 = vmatprep.subr.mxu0 0.0
    %215 = vmatpush1.msra.mxu0 0.0
    %216 = vmatprep.mubr.f32.mxu0 0.0
    %217 = vmatmul.mubr.f32.gmra.mrb[0].mxu0 %v128
    %v218 = vpop.f32.mrb[0].mxu0
    %v219 = vadd.f32 %v151, %v218
    %v220 = vpop.f32.mrb[0].mxu0
    %221 = vdwg.mxu0
    %v222 = vmax.f32 %v219, 0.0
    %v223 = vld [vmem:[#allocation4 + $0x80] sm:$0xff]
    %v224 = vld [vmem:[#allocation4 + $0x88] sm:$0xff]
    %v225 = vld [vmem:[#allocation4 + $0x90] sm:$0xff]
    %v226 = vld [vmem:[#allocation4 + $0x98] sm:$0xff]
    %v227 = vld [vmem:[#allocation4 + $0xa0] sm:$0xff]
    %v228 = vld [vmem:[#allocation4 + $0xa8] sm:$0xff]
    %v229 = vld [vmem:[#allocation4 + $0xb0] sm:$0xff]
    %v230 = vld [vmem:[#allocation4 + $0xb8] sm:$0xff]
    %v231 = vld [vmem:[#allocation4 + $0xc0] sm:$0xff]
    %v232 = vld [vmem:[#allocation4 + $0xc8] sm:$0xff]
    %v233 = vld [vmem:[#allocation4 + $0xd0] sm:$0xff]
    %v234 = vld [vmem:[#allocation4 + $0xd8] sm:$0xff]
    %v235 = vld [vmem:[#allocation4 + $0xe0] sm:$0xff]
    %v236 = vld [vmem:[#allocation4 + $0xe8] sm:$0xff]
    %v237 = vld [vmem:[#allocation4 + $0xf0] sm:$0xff]
    %v238 = vld [vmem:[#allocation4 + $0xf8] sm:$0xff]
    %v239 = vld [vmem:[#allocation6 + $0x1] sm:$0x1]
    %v240 = vlaneseq
    %v241 = vshrl.u32 %v240, 7
    %v242 = vsub.s32 0, %v241
    %v243 = vrot.slane %v239, %v242
    %244 = vmatprep.subr.mxu0 0.0
    %245 = vmatpush1.msra.mxu0 %v223
    %246 = vmatprep.subr.mxu0 0.0
    %247 = vmatpush1.msra.mxu0 %v224
    %248 = vmatprep.subr.mxu0 0.0
    %249 = vmatpush1.msra.mxu0 %v225
    %250 = vmatprep.subr.mxu0 0.0
    %251 = vmatpush1.msra.mxu0 %v226
    %252 = vmatprep.subr.mxu0 0.0
    %253 = vmatpush1.msra.mxu0 %v227
    %254 = vmatprep.subr.mxu0 0.0
    %255 = vmatpush1.msra.mxu0 %v228
    %256 = vmatprep.subr.mxu0 0.0
    %257 = vmatpush1.msra.mxu0 %v229
    %258 = vmatprep.subr.mxu0 0.0
    %259 = vmatpush1.msra.mxu0 %v230
    %260 = vmatprep.subr.mxu0 0.0
    %261 = vmatpush1.msra.mxu0 %v231
    %262 = vmatprep.subr.mxu0 0.0
    %263 = vmatpush1.msra.mxu0 %v232
    %264 = vmatprep.subr.mxu0 0.0
    %265 = vmatpush1.msra.mxu0 %v233
    %266 = vmatprep.subr.mxu0 0.0
    %267 = vmatpush1.msra.mxu0 %v234
    %268 = vmatprep.subr.mxu0 0.0
    %269 = vmatpush1.msra.mxu0 %v235
    %270 = vmatprep.subr.mxu0 0.0
    %271 = vmatpush1.msra.mxu0 %v236
    %272 = vmatprep.subr.mxu0 0.0
    %273 = vmatpush1.msra.mxu0 %v237
    %274 = vmatprep.subr.mxu0 0.0
    %275 = vmatpush1.msra.mxu0 %v238
    %276 = vmatprep.subr.mxu0 0.0
    %277 = vmatpush1.msra.mxu0 0.0
    %278 = vmatprep.subr.mxu0 0.0
    %279 = vmatpush1.msra.mxu0 0.0
    %280 = vmatprep.subr.mxu0 0.0
    %281 = vmatpush1.msra.mxu0 0.0
    %282 = vmatprep.subr.mxu0 0.0
    %283 = vmatpush1.msra.mxu0 0.0
    %284 = vmatprep.subr.mxu0 0.0
    %285 = vmatpush1.msra.mxu0 0.0
    %286 = vmatprep.subr.mxu0 0.0
    %287 = vmatpush1.msra.mxu0 0.0
    %288 = vmatprep.subr.mxu0 0.0
    %289 = vmatpush1.msra.mxu0 0.0
    %290 = vmatprep.subr.mxu0 0.0
    %291 = vmatpush1.msra.mxu0 0.0
    %292 = vmatprep.subr.mxu0 0.0
    %293 = vmatpush1.msra.mxu0 0.0
    %294 = vmatprep.subr.mxu0 0.0
    %295 = vmatpush1.msra.mxu0 0.0
    %296 = vmatprep.subr.mxu0 0.0
    %297 = vmatpush1.msra.mxu0 0.0
    %298 = vmatprep.subr.mxu0 0.0
    %299 = vmatpush1.msra.mxu0 0.0
    %300 = vmatprep.subr.mxu0 0.0
    %301 = vmatpush1.msra.mxu0 0.0
    %302 = vmatprep.subr.mxu0 0.0
    %303 = vmatpush1.msra.mxu0 0.0
    %304 = vmatprep.subr.mxu0 0.0
    %305 = vmatpush1.msra.mxu0 0.0
    %306 = vmatprep.subr.mxu0 0.0
    %307 = vmatpush1.msra.mxu0 0.0
    %308 = vmatprep.mubr.f32.mxu0 0.0
    %309 = vmatmul.mubr.f32.gmra.mrb[0].mxu0 %v222
    %v310 = vpop.f32.mrb[0].mxu0
    %v311 = vadd.f32 %v243, %v310
    %v312 = vpop.f32.mrb[0].mxu0
    %313 = vdwg.mxu0
    %v314 = vmax.f32 %v311, 0.0
    %v315 = vrot.slane %v314, 4
    %v316 = vadd.f32 %v314, %v315
    %v317 = vrot.slane %v316, 2
    %v318 = vadd.f32 %v316, %v317
    %v319 = vrot.slane %v318, 1
    %v320 = vadd.f32 %v318, %v319
    %v321 = vrcp.pop 8.0
    %v322 = vmul.f32 %v320, %v321
    %v323 = vsub.f32 %v314, %v322
    %v324 = vmul.f32 %v323, %v323
    %v325 = vrot.slane %v324, 4
    %v326 = vadd.f32 %v324, %v325
    %v327 = vrot.slane %v326, 2
    %v328 = vadd.f32 %v326, %v327
    %v329 = vrot.slane %v328, 1
    %v330 = vadd.f32 %v328, %v329
    %v331 = vmul.f32 %v330, %v321
    %v332 = vadd.f32 %v331, 1e-05
    %v333 = vrsqrt.pop %v332
    %v334 = vmul.f32 %v323, %v333
    %v335 = vld [vmem:[#allocation6 + $0x2] sm:$0x1]
    %v336 = vlaneseq
    %v337 = vshrl.u32 %v336, 7
    %v338 = vsub.s32 0, %v337
    %v339 = vrot.slane %v335, %v338
    %v340 = vmul.f32 %v334, %v339
    %v341 = vld [vmem:[#allocation6 + $0x3] sm:$0x1]
    %v342 = vlaneseq
    %v343 = vshrl.u32 %v342, 7
    %v344 = vsub.s32 0, %v343
    %v345 = vrot.slane %v341, %v344
    %v346 = vadd.f32 %v340, %v345
    %v347 = vld [vmem:[#allocation4 + $0x100] sm:$0xff]
    %v348 = vld [vmem:[#allocation4 + $0x108] sm:$0xff]
    %v349 = vld [vmem:[#allocation4 + $0x110] sm:$0xff]
    %v350 = vld [vmem:[#allocation4 + $0x118] sm:$0xff]
    %v351 = vld [vmem:[#allocation4 + $0x120] sm:$0xff]
    %v352 = vld [vmem:[#allocation4 + $0x128] sm:$0xff]
    %v353 = vld [vmem:[#allocation4 + $0x130] sm:$0xff]
    %v354 = vld [vmem:[#allocation4 + $0x138] sm:$0xff]
    %v355 = vld [vmem:[#allocation4 + $0x140] sm:$0xff]
    %v356 = vld [vmem:[#allocation4 + $0x148] sm:$0xff]
    %v357 = vld [vmem:[#allocation4 + $0x150] sm:$0xff]
    %v358 = vld [vmem:[#allocation4 + $0x158] sm:$0xff]
    %v359 = vld [vmem:[#allocation4 + $0x160] sm:$0xff]
    %v360 = vld [vmem:[#allocation4 + $0x168] sm:$0xff]
    %v361 = vld [vmem:[#allocation4 + $0x170] sm:$0xff]
    %v362 = vld [vmem:[#allocation4 + $0x178] sm:$0xff]
    %v363 = vld [vmem:[#allocation6 + $0x4] sm:$0x1]
    %v364 = vlaneseq
    %v365 = vshrl.u32 %v364, 7
    %v366 = vsub.s32 0, %v365
    %v367 = vrot.slane %v363, %v366
    %368 = vmatprep.subr.mxu0 0.0
    %369 = vmatpush1.msra.mxu0 %v347
    %370 = vmatprep.subr.mxu0 0.0
    %371 = vmatpush1.msra.mxu0 %v348
    %372 = vmatprep.subr.mxu0 0.0
    %373 = vmatpush1.msra.mxu0 %v349
    %374 = vmatprep.subr.mxu0 0.0
    %375 = vmatpush1.msra.mxu0 %v350
    %376 = vmatprep.subr.mxu0 0.0
    %377 = vmatpush1.msra.mxu0 %v351
    %378 = vmatprep.subr.mxu0 0.0
    %379 = vmatpush1.msra.mxu0 %v352
    %380 = vmatprep.subr.mxu0 0.0
    %381 = vmatpush1.msra.mxu0 %v353
    %382 = vmatprep.subr.mxu0 0.0
    %383 = vmatpush1.msra.mxu0 %v354
    %384 = vmatprep.subr.mxu0 0.0
    %385 = vmatpush1.msra.mxu0 %v355
    %386 = vmatprep.subr.mxu0 0.0
    %387 = vmatpush1.msra.mxu0 %v356
    %388 = vmatprep.subr.mxu0 0.0
    %389 = vmatpush1.msra.mxu0 %v357
    %390 = vmatprep.subr.mxu0 0.0
    %391 = vmatpush1.msra.mxu0 %v358
    %392 = vmatprep.subr.mxu0 0.0
    %393 = vmatpush1.msra.mxu0 %v359
    %394 = vmatprep.subr.mxu0 0.0
    %395 = vmatpush1.msra.mxu0 %v360
    %396 = vmatprep.subr.mxu0 0.0
    %397 = vmatpush1.msra.mxu0 %v361
    %398 = vmatprep.subr.mxu0 0.0
    %399 = vmatpush1.msra.mxu0 %v362
    %400 = vmatprep.subr.mxu0 0.0
    %401 = vmatpush1.msra.mxu0 0.0
    %402 = vmatprep.subr.mxu0 0.0
    %403 = vmatpush1.msra.mxu0 0.0
    %404 = vmatprep.subr.mxu0 0.0
    %405 = vmatpush1.msra.mxu0 0.0
    %406 = vmatprep.subr.mxu0 0.0
    %407 = vmatpush1.msra.mxu0 0.0
    %408 = vmatprep.subr.mxu0 0.0
    %409 = vmatpush1.msra.mxu0 0.0
    %410 = vmatprep.subr.mxu0 0.0
    %411 = vmatpush1.msra.mxu0 0.0
    %412 = vmatprep.subr.mxu0 0.0
    %413 = vmatpush1.msra.mxu0 0.0
    %414 = vmatprep.subr.mxu0 0.0
    %415 = vmatpush1.msra.mxu0 0.0
    %416 = vmatprep.subr.mxu0 0.0
    %417 = vmatpush1.msra.mxu0 0.0
    %418 = vmatprep.subr.mxu0 0.0
    %419 = vmatpush1.msra.mxu0 0.0
    %420 = vmatprep.subr.mxu0 0.0
    %421 = vmatpush1.msra.mxu0 0.0
    %422 = vmatprep.subr.mxu0 0.0
    %423 = vmatpush1.msra.mxu0 0.0
    %424 = vmatprep.subr.mxu0 0.0
    %425 = vmatpush1.msra.mxu0 0.0
    %426 = vmatprep.subr.mxu0 0.0
    %427 = vmatpush1.msra.mxu0 0.0
    %428 = vmatprep.subr.mxu0 0.0
    %429 = vmatpush1.msra.mxu0 0.0
    %430 = vmatprep.subr.mxu0 0.0
    %431 = vmatpush1.msra.mxu0 0.0
    %432 = vmatprep.mubr.f32.mxu0 0.0
    %433 = vmatmul.mubr.f32.gmra.mrb[0].mxu0 %v346
    %v434 = vpop.f32.mrb[0].mxu0
    %v435 = vadd.f32 %v367, %v434
    %v436 = vpop.f32.mrb[0].mxu0
    %437 = vdwg.mxu0
    %v438 = vld [vmem:[#allocation4 + $0x180] sm:$0xff]
    %v439 = vld [vmem:[#allocation4 + $0x188] sm:$0xff]
    %v440 = vld [vmem:[#allocation4 + $0x190] sm:$0xff]
    %v441 = vld [vmem:[#allocation4 + $0x198] sm:$0xff]
    %v442 = vld [vmem:[#allocation4 + $0x1a0] sm:$0xff]
    %v443 = vld [vmem:[#allocation4 + $0x1a8] sm:$0xff]
    %v444 = vld [vmem:[#allocation4 + $0x1b0] sm:$0xff]
    %v445 = vld [vmem:[#allocation4 + $0x1b8] sm:$0xff]
    %v446 = vld [vmem:[#allocation4 + $0x1c0] sm:$0xff]
    %v447 = vld [vmem:[#allocation4 + $0x1c8] sm:$0xff]
    %v448 = vld [vmem:[#allocation4 + $0x1d0] sm:$0xff]
    %v449 = vld [vmem:[#allocation4 + $0x1d8] sm:$0xff]
    %v450 = vld [vmem:[#allocation4 + $0x1e0] sm:$0xff]
    %v451 = vld [vmem:[#allocation4 + $0x1e8] sm:$0xff]
    %v452 = vld [vmem:[#allocation4 + $0x1f0] sm:$0xff]
    %v453 = vld [vmem:[#allocation4 + $0x1f8] sm:$0xff]
    %v454 = vld [vmem:[#allocation6 + $0x5] sm:$0x1]
    %v455 = vlaneseq
    %v456 = vshrl.u32 %v455, 7
    %v457 = vsub.s32 0, %v456
    %v458 = vrot.slane %v454, %v457
    %459 = vmatprep.subr.mxu0 0.0
    %460 = vmatpush1.msra.mxu0 %v438
    %461 = vmatprep.subr.mxu0 0.0
    %462 = vmatpush1.msra.mxu0 %v439
    %463 = vmatprep.subr.mxu0 0.0
    %464 = vmatpush1.msra.mxu0 %v440
    %465 = vmatprep.subr.mxu0 0.0
    %466 = vmatpush1.msra.mxu0 %v441
    %467 = vmatprep.subr.mxu0 0.0
    %468 = vmatpush1.msra.mxu0 %v442
    %469 = vmatprep.subr.mxu0 0.0
    %470 = vmatpush1.msra.mxu0 %v443
    %471 = vmatprep.subr.mxu0 0.0
    %472 = vmatpush1.msra.mxu0 %v444
    %473 = vmatprep.subr.mxu0 0.0
    %474 = vmatpush1.msra.mxu0 %v445
    %475 = vmatprep.subr.mxu0 0.0
    %476 = vmatpush1.msra.mxu0 %v446
    %477 = vmatprep.subr.mxu0 0.0
    %478 = vmatpush1.msra.mxu0 %v447
    %479 = vmatprep.subr.mxu0 0.0
    %480 = vmatpush1.msra.mxu0 %v448
    %481 = vmatprep.subr.mxu0 0.0
    %482 = vmatpush1.msra.mxu0 %v449
    %483 = vmatprep.subr.mxu0 0.0
    %484 = vmatpush1.msra.mxu0 %v450
    %485 = vmatprep.subr.mxu0 0.0
    %486 = vmatpush1.msra.mxu0 %v451
    %487 = vmatprep.subr.mxu0 0.0
    %488 = vmatpush1.msra.mxu0 %v452
    %489 = vmatprep.subr.mxu0 0.0
    %490 = vmatpush1.msra.mxu0 %v453
    %491 = vmatprep.subr.mxu0 0.0
    %492 = vmatpush1.msra.mxu0 0.0
    %493 = vmatprep.subr.mxu0 0.0
    %494 = vmatpush1.msra.mxu0 0.0
    %495 = vmatprep.subr.mxu0 0.0
    %496 = vmatpush1.msra.mxu0 0.0
    %497 = vmatprep.subr.mxu0 0.0
    %498 = vmatpush1.msra.mxu0 0.0
    %499 = vmatprep.subr.mxu0 0.0
    %500 = vmatpush1.msra.mxu0 0.0
    %501 = vmatprep.subr.mxu0 0.0
    %502 = vmatpush1.msra.mxu0 0.0
    %503 = vmatprep.subr.mxu0 0.0
    %504 = vmatpush1.msra.mxu0 0.0
    %505 = vmatprep.subr.mxu0 0.0
    %506 = vmatpush1.msra.mxu0 0.0
    %507 = vmatprep.subr.mxu0 0.0
    %508 = vmatpush1.msra.mxu0 0.0
    %509 = vmatprep.subr.mxu0 0.0
    %510 = vmatpush1.msra.mxu0 0.0
    %511 = vmatprep.subr.mxu0 0.0
    %512 = vmatpush1.msra.mxu0 0.0
    %513 = vmatprep.subr.mxu0 0.0
    %514 = vmatpush1.msra.mxu0 0.0
    %515 = vmatprep.subr.mxu0 0.0
    %516 = vmatpush1.msra.mxu0 0.0
    %517 = vmatprep.subr.mxu0 0.0
    %518 = vmatpush1.msra.mxu0 0.0
    %519 = vmatprep.subr.mxu0 0.0
    %520 = vmatpush1.msra.mxu0 0.0
    %521 = vmatprep.subr.mxu0 0.0
    %522 = vmatpush1.msra.mxu0 0.0
    %523 = vmatprep.mubr.f32.mxu0 0.0
    %524 = vmatmul.mubr.f32.gmra.mrb[0].mxu0 %v346
    %v525 = vpop.f32.mrb[0].mxu0
    %v526 = vadd.f32 %v458, %v525
    %v527 = vpop.f32.mrb[0].mxu0
    %528 = vdwg.mxu0
    %v529 = vld [vmem:[#allocation4 + $0x200] sm:$0xff]
    %v530 = vld [vmem:[#allocation4 + $0x208] sm:$0xff]
    %v531 = vld [vmem:[#allocation4 + $0x210] sm:$0xff]
    %v532 = vld [vmem:[#allocation4 + $0x218] sm:$0xff]
    %v533 = vld [vmem:[#allocation4 + $0x220] sm:$0xff]
    %v534 = vld [vmem:[#allocation4 + $0x228] sm:$0xff]
    %v535 = vld [vmem:[#allocation4 + $0x230] sm:$0xff]
    %v536 = vld [vmem:[#allocation4 + $0x238] sm:$0xff]
    %v537 = vld [vmem:[#allocation4 + $0x240] sm:$0xff]
    %v538 = vld [vmem:[#allocation4 + $0x248] sm:$0xff]
    %v539 = vld [vmem:[#allocation4 + $0x250] sm:$0xff]
    %v540 = vld [vmem:[#allocation4 + $0x258] sm:$0xff]
    %v541 = vld [vmem:[#allocation4 + $0x260] sm:$0xff]
    %v542 = vld [vmem:[#allocation4 + $0x268] sm:$0xff]
    %v543 = vld [vmem:[#allocation4 + $0x270] sm:$0xff]
    %v544 = vld [vmem:[#allocation4 + $0x278] sm:$0xff]
    %v545 = vld [vmem:[#allocation6 + $0x6] sm:$0x1]
    %v546 = vlaneseq
    %v547 = vshrl.u32 %v546, 7
    %v548 = vsub.s32 0, %v547
    %v549 = vrot.slane %v545, %v548
    %550 = vmatprep.subr.mxu0 0.0
    %551 = vmatpush1.msra.mxu0 %v529
    %552 = vmatprep.subr.mxu0 0.0
    %553 = vmatpush1.msra.mxu0 %v530
    %554 = vmatprep.subr.mxu0 0.0
    %555 = vmatpush1.msra.mxu0 %v531
    %556 = vmatprep.subr.mxu0 0.0
    %557 = vmatpush1.msra.mxu0 %v532
    %558 = vmatprep.subr.mxu0 0.0
    %559 = vmatpush1.msra.mxu0 %v533
    %560 = vmatprep.subr.mxu0 0.0
    %561 = vmatpush1.msra.mxu0 %v534
    %562 = vmatprep.subr.mxu0 0.0
    %563 = vmatpush1.msra.mxu0 %v535
    %564 = vmatprep.subr.mxu0 0.0
    %565 = vmatpush1.msra.mxu0 %v536
    %566 = vmatprep.subr.mxu0 0.0
    %567 = vmatpush1.msra.mxu0 %v537
    %568 = vmatprep.subr.mxu0 0.0
    %569 = vmatpush1.msra.mxu0 %v538
    %570 = vmatprep.subr.mxu0 0.0
    %571 = vmatpush1.msra.mxu0 %v539
    %572 = vmatprep.subr.mxu0 0.0
    %573 = vmatpush1.msra.mxu0 %v540
    %574 = vmatprep.subr.mxu0 0.0
    %575 = vmatpush1.msra.mxu0 %v541
    %576 = vmatprep.subr.mxu0 0.0
    %577 = vmatpush1.msra.mxu0 %v542
    %578 = vmatprep.subr.mxu0 0.0
    %579 = vmatpush1.msra.mxu0 %v543
    %580 = vmatprep.subr.mxu0 0.0
    %581 = vmatpush1.msra.mxu0 %v544
    %582 = vmatprep.subr.mxu0 0.0
    %583 = vmatpush1.msra.mxu0 0.0
    %584 = vmatprep.subr.mxu0 0.0
    %585 = vmatpush1.msra.mxu0 0.0
    %586 = vmatprep.subr.mxu0 0.0
    %587 = vmatpush1.msra.mxu0 0.0
    %588 = vmatprep.subr.mxu0 0.0
    %589 = vmatpush1.msra.mxu0 0.0
    %590 = vmatprep.subr.mxu0 0.0
    %591 = vmatpush1.msra.mxu0 0.0
    %592 = vmatprep.subr.mxu0 0.0
    %593 = vmatpush1.msra.mxu0 0.0
    %594 = vmatprep.subr.mxu0 0.0
    %595 = vmatpush1.msra.mxu0 0.0
    %596 = vmatprep.subr.mxu0 0.0
    %597 = vmatpush1.msra.mxu0 0.0
    %598 = vmatprep.subr.mxu0 0.0
    %599 = vmatpush1.msra.mxu0 0.0
    %600 = vmatprep.subr.mxu0 0.0
    %601 = vmatpush1.msra.mxu0 0.0
    %602 = vmatprep.subr.mxu0 0.0
    %603 = vmatpush1.msra.mxu0 0.0
    %604 = vmatprep.subr.mxu0 0.0
    %605 = vmatpush1.msra.mxu0 0.0
    %606 = vmatprep.subr.mxu0 0.0
    %607 = vmatpush1.msra.mxu0 0.0
    %608 = vmatprep.subr.mxu0 0.0
    %609 = vmatpush1.msra.mxu0 0.0
    %610 = vmatprep.subr.mxu0 0.0
    %611 = vmatpush1.msra.mxu0 0.0
    %612 = vmatprep.subr.mxu0 0.0
    %613 = vmatpush1.msra.mxu0 0.0
    %614 = vmatprep.mubr.f32.mxu0 0.0
    %615 = vmatmul.mubr.f32.gmra.mrb[0].mxu0 %v346
    %v616 = vpop.f32.mrb[0].mxu0
    %v617 = vadd.f32 %v549, %v616
    %v618 = vpop.f32.mrb[0].mxu0
    %619 = vdwg.mxu0
    %620 = vmatprep.subr.mxu0 0.0
    %621 = vmatpush1.xpose.msra.mxu0 %v526
    %622 = vmatprep.subr.mxu0 0.0
    %623 = vmatpush1.xpose.msra.mxu0 0.0
    %624 = vmatprep.subr.mxu0 0.0
    %625 = vmatpush1.xpose.msra.mxu0 0.0
    %626 = vmatprep.subr.mxu0 0.0
    %627 = vmatpush1.xpose.msra.mxu0 0.0
    %628 = vmatprep.subr.mxu0 0.0
    %629 = vmatpush1.xpose.msra.mxu0 0.0
    %630 = vmatprep.subr.mxu0 0.0
    %631 = vmatpush1.xpose.msra.mxu0 0.0
    %632 = vmatprep.subr.mxu0 0.0
    %633 = vmatpush1.xpose.msra.mxu0 0.0
    %634 = vmatprep.subr.mxu0 0.0
    %635 = vmatpush1.xpose.msra.mxu0 0.0
    %636 = vmatprep.subr.mxu0 0.0
    %637 = vmatpush1.xpose.msra.mxu0 0.0
    %638 = vmatprep.subr.mxu0 0.0
    %639 = vmatpush1.xpose.msra.mxu0 0.0
    %640 = vmatprep.subr.mxu0 0.0
    %641 = vmatpush1.xpose.msra.mxu0 0.0
    %642 = vmatprep.subr.mxu0 0.0
    %643 = vmatpush1.xpose.msra.mxu0 0.0
    %644 = vmatprep.subr.mxu0 0.0
    %645 = vmatpush1.xpose.msra.mxu0 0.0
    %646 = vmatprep.subr.mxu0 0.0
    %647 = vmatpush1.xpose.msra.mxu0 0.0
    %648 = vmatprep.subr.mxu0 0.0
    %649 = vmatpush1.xpose.msra.mxu0 0.0
    %650 = vmatprep.subr.mxu0 0.0
    %651 = vmatpush1.xpose.msra.mxu0 0.0
    %652 = vmatprep.subr.mxu0 0.0
    %653 = vmatpush1.xpose.msra.mxu0 0.0
    %654 = vmatprep.subr.mxu0 0.0
    %655 = vmatpush1.xpose.msra.mxu0 0.0
    %656 = vmatprep.subr.mxu0 0.0
    %657 = vmatpush1.xpose.msra.mxu0 0.0
    %658 = vmatprep.subr.mxu0 0.0
    %659 = vmatpush1.xpose.msra.mxu0 0.0
    %660 = vmatprep.subr.mxu0 0.0
    %661 = vmatpush1.xpose.msra.mxu0 0.0
    %662 = vmatprep.subr.mxu0 0.0
    %663 = vmatpush1.xpose.msra.mxu0 0.0
    %664 = vmatprep.subr.mxu0 0.0
    %665 = vmatpush1.xpose.msra.mxu0 0.0
    %666 = vmatprep.subr.mxu0 0.0
    %667 = vmatpush1.xpose.msra.mxu0 0.0
    %668 = vmatprep.subr.mxu0 0.0
    %669 = vmatpush1.xpose.msra.mxu0 0.0
    %670 = vmatprep.subr.mxu0 0.0
    %671 = vmatpush1.xpose.msra.mxu0 0.0
    %672 = vmatprep.subr.mxu0 0.0
    %673 = vmatpush1.xpose.msra.mxu0 0.0
    %674 = vmatprep.subr.mxu0 0.0
    %675 = vmatpush1.xpose.msra.mxu0 0.0
    %676 = vmatprep.subr.mxu0 0.0
    %677 = vmatpush1.xpose.msra.mxu0 0.0
    %678 = vmatprep.subr.mxu0 0.0
    %679 = vmatpush1.xpose.msra.mxu0 0.0
    %680 = vmatprep.subr.mxu0 0.0
    %681 = vmatpush1.xpose.msra.mxu0 0.0
    %682 = vmatprep.subr.mxu0 0.0
    %683 = vmatpush1.xpose.msra.mxu0 0.0
    %684 = vmatprep.mubr.f32.mxu0 0.0
    %685 = vmatmul.mubr.f32.gmra.mrb[0].mxu0 %v435
    %v686 = vpop.f32.mrb[0].mxu0
    %v687 = vadd.f32 0.0, %v686
    %v688 = vpop.f32.mrb[0].mxu0
    %689 = vdwg.mxu0
    %v690 = vsel %vm57, %v687, -inf
    %691 = vmax.xlane.f32.xlu0 %v690
    %v692 = vpop.xlane.xlu0 %691
    %v693 = vsub.f32 %v687, %v692
    %v694 = vmul.f32 %v693, 1.442695
    %v695 = vpow.pop %v694
    %v696 = vsel %vm57, %v695, 0.0
    %697 = vadd.xlane.f32.xlu0 %v696
    %v698 = vpop.xlane.xlu0 %697
    %v699 = vrcp.pop %v698
    %v700 = vmul.f32 %v695, %v699
    %v702 = vsel %vm57, %v700, 0
    %704 = vmatprep.subr.mxu0 0.0
    %705 = vmatpush1.msra.mxu0 %v617
    %706 = vmatprep.subr.mxu0 0.0
    %707 = vmatpush1.msra.mxu0 0.0
    %708 = vmatprep.subr.mxu0 0.0
    %709 = vmatpush1.msra.mxu0 0.0
    %710 = vmatprep.subr.mxu0 0.0
    %711 = vmatpush1.msra.mxu0 0.0
    %712 = vmatprep.subr.mxu0 0.0
    %713 = vmatpush1.msra.mxu0 0.0
    %714 = vmatprep.subr.mxu0 0.0
    %715 = vmatpush1.msra.mxu0 0.0
    %716 = vmatprep.subr.mxu0 0.0
    %717 = vmatpush1.msra.mxu0 0.0
    %718 = vmatprep.subr.mxu0 0.0
    %719 = vmatpush1.msra.mxu0 0.0
    %720 = vmatprep.subr.mxu0 0.0
    %721 = vmatpush1.msra.mxu0 0.0
    %722 = vmatprep.subr.mxu0 0.0
    %723 = vmatpush1.msra.mxu0 0.0
    %724 = vmatprep.subr.mxu0 0.0
    %725 = vmatpush1.msra.mxu0 0.0
    %726 = vmatprep.subr.mxu0 0.0
    %727 = vmatpush1.msra.mxu0 0.0
    %728 = vmatprep.subr.mxu0 0.0
    %729 = vmatpush1.msra.mxu0 0.0
    %730 = vmatprep.subr.mxu0 0.0
    %731 = vmatpush1.msra.mxu0 0.0
    %732 = vmatprep.subr.mxu0 0.0
    %733 = vmatpush1.msra.mxu0 0.0
    %734 = vmatprep.subr.mxu0 0.0
    %735 = vmatpush1.msra.mxu0 0.0
    %736 = vmatprep.subr.mxu0 0.0
    %737 = vmatpush1.msra.mxu0 0.0
    %738 = vmatprep.subr.mxu0 0.0
    %739 = vmatpush1.msra.mxu0 0.0
    %740 = vmatprep.subr.mxu0 0.0
    %741 = vmatpush1.msra.mxu0 0.0
    %742 = vmatprep.subr.mxu0 0.0
    %743 = vmatpush1.msra.mxu0 0.0
    %744 = vmatprep.subr.mxu0 0.0
    %745 = vmatpush1.msra.mxu0 0.0
    %746 = vmatprep.subr.mxu0 0.0
    %747 = vmatpush1.msra.mxu0 0.0
    %748 = vmatprep.subr.mxu0 0.0
    %749 = vmatpush1.msra.mxu0 0.0
    %750 = vmatprep.subr.mxu0 0.0
    %751 = vmatpush1.msra.mxu0 0.0
    %752 = vmatprep.subr.mxu0 0.0
    %753 = vmatpush1.msra.mxu0 0.0
    %754 = vmatprep.subr.mxu0 0.0
    %755 = vmatpush1.msra.mxu0 0.0
    %756 = vmatprep.subr.mxu0 0.0
    %757 = vmatpush1.msra.mxu0 0.0
    %758 = vmatprep.subr.mxu0 0.0
    %759 = vmatpush1.msra.mxu0 0.0
    %760 = vmatprep.subr.mxu0 0.0
    %761 = vmatpush1.msra.mxu0 0.0
    %762 = vmatprep.subr.mxu0 0.0
    %763 = vmatpush1.msra.mxu0 0.0
    %764 = vmatprep.subr.mxu0 0.0
    %765 = vmatpush1.msra.mxu0 0.0
    %766 = vmatprep.subr.mxu0 0.0
    %767 = vmatpush1.msra.mxu0 0.0
    %768 = vmatprep.mubr.f32.mxu0 0.0
    %769 = vmatmul.mubr.f32.gmra.mrb[0].mxu0 %v702
    %v770 = vpop.f32.mrb[0].mxu0
    %v771 = vadd.f32 0.0, %v770
    %v772 = vpop.f32.mrb[0].mxu0
    %773 = vdwg.mxu0
    %774 = vmatprep.subr.mxu0 0.0
    %775 = vmatpush1.msra.mxu0 %v771
    %776 = vmatprep.subr.mxu0 0.0
    %777 = vmatpush1.msra.mxu0 0.0
    %778 = vmatprep.subr.mxu0 0.0
    %779 = vmatpush1.msra.mxu0 0.0
    %780 = vmatprep.subr.mxu0 0.0
    %781 = vmatpush1.msra.mxu0 0.0
    %782 = vmatprep.subr.mxu0 0.0
    %783 = vmatpush1.msra.mxu0 0.0
    %784 = vmatprep.subr.mxu0 0.0
    %785 = vmatpush1.msra.mxu0 0.0
    %786 = vmatprep.subr.mxu0 0.0
    %787 = vmatpush1.msra.mxu0 0.0
    %788 = vmatprep.subr.mxu0 0.0
    %789 = vmatpush1.msra.mxu0 0.0
    %790 = vmatprep.subr.mxu0 0.0
    %791 = vmatpush1.msra.mxu0 0.0
    %792 = vmatprep.subr.mxu0 0.0
    %793 = vmatpush1.msra.mxu0 0.0
    %794 = vmatprep.subr.mxu0 0.0
    %795 = vmatpush1.msra.mxu0 0.0
    %796 = vmatprep.subr.mxu0 0.0
    %797 = vmatpush1.msra.mxu0 0.0
    %798 = vmatprep.subr.mxu0 0.0
    %799 = vmatpush1.msra.mxu0 0.0
    %800 = vmatprep.subr.mxu0 0.0
    %801 = vmatpush1.msra.mxu0 0.0
    %802 = vmatprep.subr.mxu0 0.0
    %803 = vmatpush1.msra.mxu0 0.0
    %804 = vmatprep.subr.mxu0 0.0
    %805 = vmatpush1.msra.mxu0 0.0
    %806 = vmatprep.subr.mxu0 0.0
    %807 = vmatpush1.msra.mxu0 0.0
    %808 = vmatprep.subr.mxu0 0.0
    %809 = vmatpush1.msra.mxu0 0.0
    %810 = vmatprep.subr.mxu0 0.0
    %811 = vmatpush1.msra.mxu0 0.0
    %812 = vmatprep.subr.mxu0 0.0
    %813 = vmatpush1.msra.mxu0 0.0
    %814 = vmatprep.subr.mxu0 0.0
    %815 = vmatpush1.msra.mxu0 0.0
    %816 = vmatprep.subr.mxu0 0.0
    %817 = vmatpush1.msra.mxu0 0.0
    %818 = vmatprep.subr.mxu0 0.0
    %819 = vmatpush1.msra.mxu0 0.0
    %820 = vmatprep.subr.mxu0 0.0
    %821 = vmatpush1.msra.mxu0 0.0
    %822 = vmatprep.subr.mxu0 0.0
    %823 = vmatpush1.msra.mxu0 0.0
    %824 = vmatprep.subr.mxu0 0.0
    %825 = vmatpush1.msra.mxu0 0.0
    %826 = vmatprep.subr.mxu0 0.0
    %827 = vmatpush1.msra.mxu0 0.0
    %828 = vmatprep.subr.mxu0 0.0
    %829 = vmatpush1.msra.mxu0 0.0
    %830 = vmatprep.subr.mxu0 0.0
    %831 = vmatpush1.msra.mxu0 0.0
    %832 = vmatprep.subr.mxu0 0.0
    %833 = vmatpush1.msra.mxu0 0.0
    %834 = vmatprep.subr.mxu0 0.0
    %835 = vmatpush1.msra.mxu0 0.0
    %836 = vmatprep.subr.mxu0 0.0
    %837 = vmatpush1.msra.mxu0 0.0
    %838 = vmatprep.mubr.f32.mxu0 0.0
    %839 = vmatmul.mubr.f32.gmra.mrb[0].mxu0 %v59
    %v840 = vpop.f32.mrb[0].mxu0
    %v841 = vadd.f32 0.0, %v840
    %v842 = vpop.f32.mrb[0].mxu0
    %843 = vdwg.mxu0
    %v844 = vld [vmem:[#allocation4 + $0x280] sm:$0xff]
    %v845 = vld [vmem:[#allocation4 + $0x288] sm:$0xff]
    %v846 = vld [vmem:[#allocation4 + $0x290] sm:$0xff]
    %v847 = vld [vmem:[#allocation4 + $0x298] sm:$0xff]
    %v848 = vld [vmem:[#allocation4 + $0x2a0] sm:$0xff]
    %v849 = vld [vmem:[#allocation4 + $0x2a8] sm:$0xff]
    %v850 = vld [vmem:[#allocation4 + $0x2b0] sm:$0xff]
    %v851 = vld [vmem:[#allocation4 + $0x2b8] sm:$0xff]
    %v852 = vld [vmem:[#allocation4 + $0x2c0] sm:$0xff]
    %v853 = vld [vmem:[#allocation4 + $0x2c8] sm:$0xff]
    %v854 = vld [vmem:[#allocation4 + $0x2d0] sm:$0xff]
    %v855 = vld [vmem:[#allocation4 + $0x2d8] sm:$0xff]
    %v856 = vld [vmem:[#allocation4 + $0x2e0] sm:$0xff]
    %v857 = vld [vmem:[#allocation4 + $0x2e8] sm:$0xff]
    %v858 = vld [vmem:[#allocation4 + $0x2f0] sm:$0xff]
    %v859 = vld [vmem:[#allocation4 + $0x2f8] sm:$0xff]
    %v860 = vld [vmem:[#allocation6 + $0x7] sm:$0x1]
    %v861 = vlaneseq
    %v862 = vshrl.u32 %v861, 7
    %v863 = vsub.s32 0, %v862
    %v864 = vrot.slane %v860, %v863
    %865 = vmatprep.subr.mxu0 0.0
    %866 = vmatpush1.msra.mxu0 %v844
    %867 = vmatprep.subr.mxu0 0.0
    %868 = vmatpush1.msra.mxu0 %v845
    %869 = vmatprep.subr.mxu0 0.0
    %870 = vmatpush1.msra.mxu0 %v846
    %871 = vmatprep.subr.mxu0 0.0
    %872 = vmatpush1.msra.mxu0 %v847
    %873 = vmatprep.subr.mxu0 0.0
    %874 = vmatpush1.msra.mxu0 %v848
    %875 = vmatprep.subr.mxu0 0.0
    %876 = vmatpush1.msra.mxu0 %v849
    %877 = vmatprep.subr.mxu0 0.0
    %878 = vmatpush1.msra.mxu0 %v850
    %879 = vmatprep.subr.mxu0 0.0
    %880 = vmatpush1.msra.mxu0 %v851
    %881 = vmatprep.subr.mxu0 0.0
    %882 = vmatpush1.msra.mxu0 %v852
    %883 = vmatprep.subr.mxu0 0.0
    %884 = vmatpush1.msra.mxu0 %v853
    %885 = vmatprep.subr.mxu0 0.0
    %886 = vmatpush1.msra.mxu0 %v854
    %887 = vmatprep.subr.mxu0 0.0
    %888 = vmatpush1.msra.mxu0 %v855
    %889 = vmatprep.subr.mxu0 0.0
    %890 = vmatpush1.msra.mxu0 %v856
    %891 = vmatprep.subr.mxu0 0.0
    %892 = vmatpush1.msra.mxu0 %v857
    %893 = vmatprep.subr.mxu0 0.0
    %894 = vmatpush1.msra.mxu0 %v858
    %895 = vmatprep.subr.mxu0 0.0
    %896 = vmatpush1.msra.mxu0 %v859
    %897 = vmatprep.subr.mxu0 0.0
    %898 = vmatpush1.msra.mxu0 0.0
    %899 = vmatprep.subr.mxu0 0.0
    %900 = vmatpush1.msra.mxu0 0.0
    %901 = vmatprep.subr.mxu0 0.0
    %902 = vmatpush1.msra.mxu0 0.0
    %903 = vmatprep.subr.mxu0 0.0
    %904 = vmatpush1.msra.mxu0 0.0
    %905 = vmatprep.subr.mxu0 0.0
    %906 = vmatpush1.msra.mxu0 0.0
    %907 = vmatprep.subr.mxu0 0.0
    %908 = vmatpush1.msra.mxu0 0.0
    %909 = vmatprep.subr.mxu0 0.0
    %910 = vmatpush1.msra.mxu0 0.0
    %911 = vmatprep.subr.mxu0 0.0
    %912 = vmatpush1.msra.mxu0 0.0
    %913 = vmatprep.subr.mxu0 0.0
    %914 = vmatpush1.msra.mxu0 0.0
    %915 = vmatprep.subr.mxu0 0.0
    %916 = vmatpush1.msra.mxu0 0.0
    %917 = vmatprep.subr.mxu0 0.0
    %918 = vmatpush1.msra.mxu0 0.0
    %919 = vmatprep.subr.mxu0 0.0
    %920 = vmatpush1.msra.mxu0 0.0
    %921 = vmatprep.subr.mxu0 0.0
    %922 = vmatpush1.msra.mxu0 0.0
    %923 = vmatprep.subr.mxu0 0.0
    %924 = vmatpush1.msra.mxu0 0.0
    %925 = vmatprep.subr.mxu0 0.0
    %926 = vmatpush1.msra.mxu0 0.0
    %927 = vmatprep.subr.mxu0 0.0
    %928 = vmatpush1.msra.mxu0 0.0
    %929 = vmatprep.mubr.f32.mxu0 0.0
    %930 = vmatmul.mubr.f32.gmra.mrb[0].mxu0 %v841
    %v931 = vpop.f32.mrb[0].mxu0
    %v932 = vadd.f32 %v864, %v931
    %v933 = vpop.f32.mrb[0].mxu0
    %934 = vdwg.mxu0
    %v935 = vmax.f32 %v932, 0.0
    %v936 = vld [vmem:[#allocation4 + $0x300] sm:$0xff]
    %v937 = vld [vmem:[#allocation4 + $0x308] sm:$0xff]
    %v938 = vld [vmem:[#allocation4 + $0x310] sm:$0xff]
    %v939 = vld [vmem:[#allocation4 + $0x318] sm:$0xff]
    %v940 = vld [vmem:[#allocation4 + $0x320] sm:$0xff]
    %v941 = vld [vmem:[#allocation4 + $0x328] sm:$0xff]
    %v942 = vld [vmem:[#allocation4 + $0x330] sm:$0xff]
    %v943 = vld [vmem:[#allocation4 + $0x338] sm:$0xff]
    %v944 = vld [vmem:[#allocation4 + $0x340] sm:$0xff]
    %v945 = vld [vmem:[#allocation4 + $0x348] sm:$0xff]
    %v946 = vld [vmem:[#allocation4 + $0x350] sm:$0xff]
    %v947 = vld [vmem:[#allocation4 + $0x358] sm:$0xff]
    %v948 = vld [vmem:[#allocation4 + $0x360] sm:$0xff]
    %v949 = vld [vmem:[#allocation4 + $0x368] sm:$0xff]
    %v950 = vld [vmem:[#allocation4 + $0x370] sm:$0xff]
    %v951 = vld [vmem:[#allocation4 + $0x378] sm:$0xff]
    %v952 = vld [vmem:[#allocation6 + $0x8] sm:$0x1]
    %v953 = vlaneseq
    %v954 = vshrl.u32 %v953, 7
    %v955 = vsub.s32 0, %v954
    %v956 = vrot.slane %v952, %v955
    %957 = vmatprep.subr.mxu0 0.0
    %958 = vmatpush1.msra.mxu0 %v936
    %959 = vmatprep.subr.mxu0 0.0
    %960 = vmatpush1.msra.mxu0 %v937
    %961 = vmatprep.subr.mxu0 0.0
    %962 = vmatpush1.msra.mxu0 %v938
    %963 = vmatprep.subr.mxu0 0.0
    %964 = vmatpush1.msra.mxu0 %v939
    %965 = vmatprep.subr.mxu0 0.0
    %966 = vmatpush1.msra.mxu0 %v940
    %967 = vmatprep.subr.mxu0 0.0
    %968 = vmatpush1.msra.mxu0 %v941
    %969 = vmatprep.subr.mxu0 0.0
    %970 = vmatpush1.msra.mxu0 %v942
    %971 = vmatprep.subr.mxu0 0.0
    %972 = vmatpush1.msra.mxu0 %v943
    %973 = vmatprep.subr.mxu0 0.0
    %974 = vmatpush1.msra.mxu0 %v944
    %975 = vmatprep.subr.mxu0 0.0
    %976 = vmatpush1.msra.mxu0 %v945
    %977 = vmatprep.subr.mxu0 0.0
    %978 = vmatpush1.msra.mxu0 %v946
    %979 = vmatprep.subr.mxu0 0.0
    %980 = vmatpush1.msra.mxu0 %v947
    %981 = vmatprep.subr.mxu0 0.0
    %982 = vmatpush1.msra.mxu0 %v948
    %983 = vmatprep.subr.mxu0 0.0
    %984 = vmatpush1.msra.mxu0 %v949
    %985 = vmatprep.subr.mxu0 0.0
    %986 = vmatpush1.msra.mxu0 %v950
    %987 = vmatprep.subr.mxu0 0.0
    %988 = vmatpush1.msra.mxu0 %v951
    %989 = vmatprep.subr.mxu0 0.0
    %990 = vmatpush1.msra.mxu0 0.0
    %991 = vmatprep.subr.mxu0 0.0
    %992 = vmatpush1.msra.mxu0 0.0
    %993 = vmatprep.subr.mxu0 0.0
    %994 = vmatpush1.msra.mxu0 0.0
    %995 = vmatprep.subr.mxu0 0.0
    %996 = vmatpush1.msra.mxu0 0.0
    %997 = vmatprep.subr.mxu0 0.0
    %998 = vmatpush1.msra.mxu0 0.0
    %999 = vmatprep.subr.mxu0 0.0
    %1000 = vmatpush1.msra.mxu0 0.0
    %1001 = vmatprep.subr.mxu0 0.0
    %1002 = vmatpush1.msra.mxu0 0.0
    %1003 = vmatprep.subr.mxu0 0.0
    %1004 = vmatpush1.msra.mxu0 0.0
    %1005 = vmatprep.subr.mxu0 0.0
    %1006 = vmatpush1.msra.mxu0 0.0
    %1007 = vmatprep.subr.mxu0 0.0
    %1008 = vmatpush1.msra.mxu0 0.0
    %1009 = vmatprep.subr.mxu0 0.0
    %1010 = vmatpush1.msra.mxu0 0.0
    %1011 = vmatprep.subr.mxu0 0.0
    %1012 = vmatpush1.msra.mxu0 0.0
    %1013 = vmatprep.subr.mxu0 0.0
    %1014 = vmatpush1.msra.mxu0 0.0
    %1015 = vmatprep.subr.mxu0 0.0
    %1016 = vmatpush1.msra.mxu0 0.0
    %1017 = vmatprep.subr.mxu0 0.0
    %1018 = vmatpush1.msra.mxu0 0.0
    %1019 = vmatprep.subr.mxu0 0.0
    %1020 = vmatpush1.msra.mxu0 0.0
    %1021 = vmatprep.mubr.f32.mxu0 0.0
    %1022 = vmatmul.mubr.f32.gmra.mrb[0].mxu0 %v935
    %v1023 = vpop.f32.mrb[0].mxu0
    %v1024 = vadd.f32 %v956, %v1023
    %v1025 = vpop.f32.mrb[0].mxu0
    %1026 = vdwg.mxu0
    %v1027 = vmax.f32 %v1024, 0.0
    %v1028 = vrot.slane %v1027, 4
    %v1029 = vadd.f32 %v1027, %v1028
    %v1030 = vrot.slane %v1029, 2
    %v1031 = vadd.f32 %v1029, %v1030
    %v1032 = vrot.slane %v1031, 1
    %v1033 = vadd.f32 %v1031, %v1032
    %v1034 = vmul.f32 %v1033, %v321
    %v1035 = vsub.f32 %v1027, %v1034
    %v1036 = vmul.f32 %v1035, %v1035
    %v1037 = vrot.slane %v1036, 4
    %v1038 = vadd.f32 %v1036, %v1037
    %v1039 = vrot.slane %v1038, 2
    %v1040 = vadd.f32 %v1038, %v1039
    %v1041 = vrot.slane %v1040, 1
    %v1042 = vadd.f32 %v1040, %v1041
    %v1043 = vmul.f32 %v1042, %v321
    %v1044 = vadd.f32 %v1043, 1e-05
    %v1045 = vrsqrt.pop %v1044
    %v1046 = vmul.f32 %v1035, %v1045
    %v1047 = vld [vmem:[#allocation6 + $0x9] sm:$0x1]
    %v1048 = vlaneseq
    %v1049 = vshrl.u32 %v1048, 7
    %v1050 = vsub.s32 0, %v1049
    %v1051 = vrot.slane %v1047, %v1050
    %v1052 = vmul.f32 %v1046, %v1051
    %v1053 = vld [vmem:[#allocation6 + $0xa] sm:$0x1]
    %v1054 = vlaneseq
    %v1055 = vshrl.u32 %v1054, 7
    %v1056 = vsub.s32 0, %v1055
    %v1057 = vrot.slane %v1053, %v1056
    %v1058 = vadd.f32 %v1052, %v1057
    %v1059 = vld [vmem:[#allocation4 + $0x380] sm:$0xff]
    %v1060 = vld [vmem:[#allocation4 + $0x388] sm:$0xff]
    %v1061 = vld [vmem:[#allocation4 + $0x390] sm:$0xff]
    %v1062 = vld [vmem:[#allocation4 + $0x398] sm:$0xff]
    %v1063 = vld [vmem:[#allocation4 + $0x3a0] sm:$0xff]
    %v1064 = vld [vmem:[#allocation4 + $0x3a8] sm:$0xff]
    %v1065 = vld [vmem:[#allocation4 + $0x3b0] sm:$0xff]
    %v1066 = vld [vmem:[#allocation4 + $0x3b8] sm:$0xff]
    %v1067 = vld [vmem:[#allocation4 + $0x3c0] sm:$0xff]
    %v1068 = vld [vmem:[#allocation4 + $0x3c8] sm:$0xff]
    %v1069 = vld [vmem:[#allocation4 + $0x3d0] sm:$0xff]
    %v1070 = vld [vmem:[#allocation4 + $0x3d8] sm:$0xff]
    %v1071 = vld [vmem:[#allocation4 + $0x3e0] sm:$0xff]
    %v1072 = vld [vmem:[#allocation4 + $0x3e8] sm:$0xff]
    %v1073 = vld [vmem:[#allocation4 + $0x3f0] sm:$0xff]
    %v1074 = vld [vmem:[#allocation4 + $0x3f8] sm:$0xff]
    %v1075 = vld [vmem:[#allocation6 + $0xb] sm:$0x1]
    %v1076 = vlaneseq
    %v1077 = vshrl.u32 %v1076, 7
    %v1078 = vsub.s32 0, %v1077
    %v1079 = vrot.slane %v1075, %v1078
    %1080 = vmatprep.subr.mxu0 0.0
    %1081 = vmatpush1.msra.mxu0 %v1059
    %1082 = vmatprep.subr.mxu0 0.0
    %1083 = vmatpush1.msra.mxu0 %v1060
    %1084 = vmatprep.subr.mxu0 0.0
    %1085 = vmatpush1.msra.mxu0 %v1061
    %1086 = vmatprep.subr.mxu0 0.0
    %1087 = vmatpush1.msra.mxu0 %v1062
    %1088 = vmatprep.subr.mxu0 0.0
    %1089 = vmatpush1.msra.mxu0 %v1063
    %1090 = vmatprep.subr.mxu0 0.0
    %1091 = vmatpush1.msra.mxu0 %v1064
    %1092 = vmatprep.subr.mxu0 0.0
    %1093 = vmatpush1.msra.mxu0 %v1065
    %1094 = vmatprep.subr.mxu0 0.0
    %1095 = vmatpush1.msra.mxu0 %v1066
    %1096 = vmatprep.subr.mxu0 0.0
    %1097 = vmatpush1.msra.mxu0 %v1067
    %1098 = vmatprep.subr.mxu0 0.0
    %1099 = vmatpush1.msra.mxu0 %v1068
    %1100 = vmatprep.subr.mxu0 0.0
    %1101 = vmatpush1.msra.mxu0 %v1069
    %1102 = vmatprep.subr.mxu0 0.0
    %1103 = vmatpush1.msra.mxu0 %v1070
    %1104 = vmatprep.subr.mxu0 0.0
    %1105 = vmatpush1.msra.mxu0 %v1071
    %1106 = vmatprep.subr.mxu0 0.0
    %1107 = vmatpush1.msra.mxu0 %v1072
    %1108 = vmatprep.subr.mxu0 0.0
    %1109 = vmatpush1.msra.mxu0 %v1073
    %1110 = vmatprep.subr.mxu0 0.0
    %1111 = vmatpush1.msra.mxu0 %v1074
    %1112 = vmatprep.subr.mxu0 0.0
    %1113 = vmatpush1.msra.mxu0 0.0
    %1114 = vmatprep.subr.mxu0 0.0
    %1115 = vmatpush1.msra.mxu0 0.0
    %1116 = vmatprep.subr.mxu0 0.0
    %1117 = vmatpush1.msra.mxu0 0.0
    %1118 = vmatprep.subr.mxu0 0.0
    %1119 = vmatpush1.msra.mxu0 0.0
    %1120 = vmatprep.subr.mxu0 0.0
    %1121 = vmatpush1.msra.mxu0 0.0
    %1122 = vmatprep.subr.mxu0 0.0
    %1123 = vmatpush1.msra.mxu0 0.0
    %1124 = vmatprep.subr.mxu0 0.0
    %1125 = vmatpush1.msra.mxu0 0.0
    %1126 = vmatprep.subr.mxu0 0.0
    %1127 = vmatpush1.msra.mxu0 0.0
    %1128 = vmatprep.subr.mxu0 0.0
    %1129 = vmatpush1.msra.mxu0 0.0
    %1130 = vmatprep.subr.mxu0 0.0
    %1131 = vmatpush1.msra.mxu0 0.0
    %1132 = vmatprep.subr.mxu0 0.0
    %1133 = vmatpush1.msra.mxu0 0.0
    %1134 = vmatprep.subr.mxu0 0.0
    %1135 = vmatpush1.msra.mxu0 0.0
    %1136 = vmatprep.subr.mxu0 0.0
    %1137 = vmatpush1.msra.mxu0 0.0
    %1138 = vmatprep.subr.mxu0 0.0
    %1139 = vmatpush1.msra.mxu0 0.0
    %1140 = vmatprep.subr.mxu0 0.0
    %1141 = vmatpush1.msra.mxu0 0.0
    %1142 = vmatprep.subr.mxu0 0.0
    %1143 = vmatpush1.msra.mxu0 0.0
    %1144 = vmatprep.mubr.f32.mxu0 0.0
    %1145 = vmatmul.mubr.f32.gmra.mrb[0].mxu0 %v1058
    %v1146 = vpop.f32.mrb[0].mxu0
    %v1147 = vadd.f32 %v1079, %v1146
    %v1148 = vpop.f32.mrb[0].mxu0
    %1149 = vdwg.mxu0
    %v1150 = vld [vmem:[#allocation4 + $0x400] sm:$0xff]
    %v1151 = vld [vmem:[#allocation4 + $0x408] sm:$0xff]
    %v1152 = vld [vmem:[#allocation4 + $0x410] sm:$0xff]
    %v1153 = vld [vmem:[#allocation4 + $0x418] sm:$0xff]
    %v1154 = vld [vmem:[#allocation4 + $0x420] sm:$0xff]
    %v1155 = vld [vmem:[#allocation4 + $0x428] sm:$0xff]
    %v1156 = vld [vmem:[#allocation4 + $0x430] sm:$0xff]
    %v1157 = vld [vmem:[#allocation4 + $0x438] sm:$0xff]
    %v1158 = vld [vmem:[#allocation4 + $0x440] sm:$0xff]
    %v1159 = vld [vmem:[#allocation4 + $0x448] sm:$0xff]
    %v1160 = vld [vmem:[#allocation4 + $0x450] sm:$0xff]
    %v1161 = vld [vmem:[#allocation4 + $0x458] sm:$0xff]
    %v1162 = vld [vmem:[#allocation4 + $0x460] sm:$0xff]
    %v1163 = vld [vmem:[#allocation4 + $0x468] sm:$0xff]
    %v1164 = vld [vmem:[#allocation4 + $0x470] sm:$0xff]
    %v1165 = vld [vmem:[#allocation4 + $0x478] sm:$0xff]
    %v1166 = vld [vmem:[#allocation6 + $0xc] sm:$0x1]
    %v1167 = vlaneseq
    %v1168 = vshrl.u32 %v1167, 7
    %v1169 = vsub.s32 0, %v1168
    %v1170 = vrot.slane %v1166, %v1169
    %1171 = vmatprep.subr.mxu0 0.0
    %1172 = vmatpush1.msra.mxu0 %v1150
    %1173 = vmatprep.subr.mxu0 0.0
    %1174 = vmatpush1.msra.mxu0 %v1151
    %1175 = vmatprep.subr.mxu0 0.0
    %1176 = vmatpush1.msra.mxu0 %v1152
    %1177 = vmatprep.subr.mxu0 0.0
    %1178 = vmatpush1.msra.mxu0 %v1153
    %1179 = vmatprep.subr.mxu0 0.0
    %1180 = vmatpush1.msra.mxu0 %v1154
    %1181 = vmatprep.subr.mxu0 0.0
    %1182 = vmatpush1.msra.mxu0 %v1155
    %1183 = vmatprep.subr.mxu0 0.0
    %1184 = vmatpush1.msra.mxu0 %v1156
    %1185 = vmatprep.subr.mxu0 0.0
    %1186 = vmatpush1.msra.mxu0 %v1157
    %1187 = vmatprep.subr.mxu0 0.0
    %1188 = vmatpush1.msra.mxu0 %v1158
    %1189 = vmatprep.subr.mxu0 0.0
    %1190 = vmatpush1.msra.mxu0 %v1159
    %1191 = vmatprep.subr.mxu0 0.0
    %1192 = vmatpush1.msra.mxu0 %v1160
    %1193 = vmatprep.subr.mxu0 0.0
    %1194 = vmatpush1.msra.mxu0 %v1161
    %1195 = vmatprep.subr.mxu0 0.0
    %1196 = vmatpush1.msra.mxu0 %v1162
    %1197 = vmatprep.subr.mxu0 0.0
    %1198 = vmatpush1.msra.mxu0 %v1163
    %1199 = vmatprep.subr.mxu0 0.0
    %1200 = vmatpush1.msra.mxu0 %v1164
    %1201 = vmatprep.subr.mxu0 0.0
    %1202 = vmatpush1.msra.mxu0 %v1165
    %1203 = vmatprep.subr.mxu0 0.0
    %1204 = vmatpush1.msra.mxu0 0.0
    %1205 = vmatprep.subr.mxu0 0.0
    %1206 = vmatpush1.msra.mxu0 0.0
    %1207 = vmatprep.subr.mxu0 0.0
    %1208 = vmatpush1.msra.mxu0 0.0
    %1209 = vmatprep.subr.mxu0 0.0
    %1210 = vmatpush1.msra.mxu0 0.0
    %1211 = vmatprep.subr.mxu0 0.0
    %1212 = vmatpush1.msra.mxu0 0.0
    %1213 = vmatprep.subr.mxu0 0.0
    %1214 = vmatpush1.msra.mxu0 0.0
    %1215 = vmatprep.subr.mxu0 0.0
    %1216 = vmatpush1.msra.mxu0 0.0
    %1217 = vmatprep.subr.mxu0 0.0
    %1218 = vmatpush1.msra.mxu0 0.0
    %1219 = vmatprep.subr.mxu0 0.0
    %1220 = vmatpush1.msra.mxu0 0.0
    %1221 = vmatprep.subr.mxu0 0.0
    %1222 = vmatpush1.msra.mxu0 0.0
    %1223 = vmatprep.subr.mxu0 0.0
    %1224 = vmatpush1.msra.mxu0 0.0
    %1225 = vmatprep.subr.mxu0 0.0
    %1226 = vmatpush1.msra.mxu0 0.0
    %1227 = vmatprep.subr.mxu0 0.0
    %1228 = vmatpush1.msra.mxu0 0.0
    %1229 = vmatprep.subr.mxu0 0.0
    %1230 = vmatpush1.msra.mxu0 0.0
    %1231 = vmatprep.subr.mxu0 0.0
    %1232 = vmatpush1.msra.mxu0 0.0
    %1233 = vmatprep.subr.mxu0 0.0
    %1234 = vmatpush1.msra.mxu0 0.0
    %1235 = vmatprep.mubr.f32.mxu0 0.0
    %1236 = vmatmul.mubr.f32.gmra.mrb[0].mxu0 %v1058
    %v1237 = vpop.f32.mrb[0].mxu0
    %v1238 = vadd.f32 %v1170, %v1237
    %v1239 = vpop.f32.mrb[0].mxu0
    %1240 = vdwg.mxu0
    %v1241 = vld [vmem:[#allocation4 + $0x480] sm:$0xff]
    %v1242 = vld [vmem:[#allocation4 + $0x488] sm:$0xff]
    %v1243 = vld [vmem:[#allocation4 + $0x490] sm:$0xff]
    %v1244 = vld [vmem:[#allocation4 + $0x498] sm:$0xff]
    %v1245 = vld [vmem:[#allocation4 + $0x4a0] sm:$0xff]
    %v1246 = vld [vmem:[#allocation4 + $0x4a8] sm:$0xff]
    %v1247 = vld [vmem:[#allocation4 + $0x4b0] sm:$0xff]
    %v1248 = vld [vmem:[#allocation4 + $0x4b8] sm:$0xff]
    %v1249 = vld [vmem:[#allocation4 + $0x4c0] sm:$0xff]
    %v1250 = vld [vmem:[#allocation4 + $0x4c8] sm:$0xff]
    %v1251 = vld [vmem:[#allocation4 + $0x4d0] sm:$0xff]
    %v1252 = vld [vmem:[#allocation4 + $0x4d8] sm:$0xff]
    %v1253 = vld [vmem:[#allocation4 + $0x4e0] sm:$0xff]
    %v1254 = vld [vmem:[#allocation4 + $0x4e8] sm:$0xff]
    %v1255 = vld [vmem:[#allocation4 + $0x4f0] sm:$0xff]
    %v1256 = vld [vmem:[#allocation4 + $0x4f8] sm:$0xff]
    %v1257 = vld [vmem:[#allocation6 + $0xd] sm:$0x1]
    %v1258 = vlaneseq
    %v1259 = vshrl.u32 %v1258, 7
    %v1260 = vsub.s32 0, %v1259
    %v1261 = vrot.slane %v1257, %v1260
    %1262 = vmatprep.subr.mxu0 0.0
    %1263 = vmatpush1.msra.mxu0 %v1241
    %1264 = vmatprep.subr.mxu0 0.0
    %1265 = vmatpush1.msra.mxu0 %v1242
    %1266 = vmatprep.subr.mxu0 0.0
    %1267 = vmatpush1.msra.mxu0 %v1243
    %1268 = vmatprep.subr.mxu0 0.0
    %1269 = vmatpush1.msra.mxu0 %v1244
    %1270 = vmatprep.subr.mxu0 0.0
    %1271 = vmatpush1.msra.mxu0 %v1245
    %1272 = vmatprep.subr.mxu0 0.0
    %1273 = vmatpush1.msra.mxu0 %v1246
    %1274 = vmatprep.subr.mxu0 0.0
    %1275 = vmatpush1.msra.mxu0 %v1247
    %1276 = vmatprep.subr.mxu0 0.0
    %1277 = vmatpush1.msra.mxu0 %v1248
    %1278 = vmatprep.subr.mxu0 0.0
    %1279 = vmatpush1.msra.mxu0 %v1249
    %1280 = vmatprep.subr.mxu0 0.0
    %1281 = vmatpush1.msra.mxu0 %v1250
    %1282 = vmatprep.subr.mxu0 0.0
    %1283 = vmatpush1.msra.mxu0 %v1251
    %1284 = vmatprep.subr.mxu0 0.0
    %1285 = vmatpush1.msra.mxu0 %v1252
    %1286 = vmatprep.subr.mxu0 0.0
    %1287 = vmatpush1.msra.mxu0 %v1253
    %1288 = vmatprep.subr.mxu0 0.0
    %1289 = vmatpush1.msra.mxu0 %v1254
    %1290 = vmatprep.subr.mxu0 0.0
    %1291 = vmatpush1.msra.mxu0 %v1255
    %1292 = vmatprep.subr.mxu0 0.0
    %1293 = vmatpush1.msra.mxu0 %v1256
    %1294 = vmatprep.subr.mxu0 0.0
    %1295 = vmatpush1.msra.mxu0 0.0
    %1296 = vmatprep.subr.mxu0 0.0
    %1297 = vmatpush1.msra.mxu0 0.0
    %1298 = vmatprep.subr.mxu0 0.0
    %1299 = vmatpush1.msra.mxu0 0.0
    %1300 = vmatprep.subr.mxu0 0.0
    %1301 = vmatpush1.msra.mxu0 0.0
    %1302 = vmatprep.subr.mxu0 0.0
    %1303 = vmatpush1.msra.mxu0 0.0
    %1304 = vmatprep.subr.mxu0 0.0
    %1305 = vmatpush1.msra.mxu0 0.0
    %1306 = vmatprep.subr.mxu0 0.0
    %1307 = vmatpush1.msra.mxu0 0.0
    %1308 = vmatprep.subr.mxu0 0.0
    %1309 = vmatpush1.msra.mxu0 0.0
    %1310 = vmatprep.subr.mxu0 0.0
    %1311 = vmatpush1.msra.mxu0 0.0
    %1312 = vmatprep.subr.mxu0 0.0
    %1313 = vmatpush1.msra.mxu0 0.0
    %1314 = vmatprep.subr.mxu0 0.0
    %1315 = vmatpush1.msra.mxu0 0.0
    %1316 = vmatprep.subr.mxu0 0.0
    %1317 = vmatpush1.msra.mxu0 0.0
    %1318 = vmatprep.subr.mxu0 0.0
    %1319 = vmatpush1.msra.mxu0 0.0
    %1320 = vmatprep.subr.mxu0 0.0
    %1321 = vmatpush1.msra.mxu0 0.0
    %1322 = vmatprep.subr.mxu0 0.0
    %1323 = vmatpush1.msra.mxu0 0.0
    %1324 = vmatprep.subr.mxu0 0.0
    %1325 = vmatpush1.msra.mxu0 0.0
    %1326 = vmatprep.mubr.f32.mxu0 0.0
    %1327 = vmatmul.mubr.f32.gmra.mrb[0].mxu0 %v1058
    %v1328 = vpop.f32.mrb[0].mxu0
    %v1329 = vadd.f32 %v1261, %v1328
    %v1330 = vpop.f32.mrb[0].mxu0
    %1331 = vdwg.mxu0
    %1332 = vmatprep.subr.mxu0 0.0
    %1333 = vmatpush1.xpose.msra.mxu0 %v1238
    %1334 = vmatprep.subr.mxu0 0.0
    %1335 = vmatpush1.xpose.msra.mxu0 0.0
    %1336 = vmatprep.subr.mxu0 0.0
    %1337 = vmatpush1.xpose.msra.mxu0 0.0
    %1338 = vmatprep.subr.mxu0 0.0
    %1339 = vmatpush1.xpose.msra.mxu0 0.0
    %1340 = vmatprep.subr.mxu0 0.0
    %1341 = vmatpush1.xpose.msra.mxu0 0.0
    %1342 = vmatprep.subr.mxu0 0.0
    %1343 = vmatpush1.xpose.msra.mxu0 0.0
    %1344 = vmatprep.subr.mxu0 0.0
    %1345 = vmatpush1.xpose.msra.mxu0 0.0
    %1346 = vmatprep.subr.mxu0 0.0
    %1347 = vmatpush1.xpose.msra.mxu0 0.0
    %1348 = vmatprep.subr.mxu0 0.0
    %1349 = vmatpush1.xpose.msra.mxu0 0.0
    %1350 = vmatprep.subr.mxu0 0.0
    %1351 = vmatpush1.xpose.msra.mxu0 0.0
    %1352 = vmatprep.subr.mxu0 0.0
    %1353 = vmatpush1.xpose.msra.mxu0 0.0
    %1354 = vmatprep.subr.mxu0 0.0
    %1355 = vmatpush1.xpose.msra.mxu0 0.0
    %1356 = vmatprep.subr.mxu0 0.0
    %1357 = vmatpush1.xpose.msra.mxu0 0.0
    %1358 = vmatprep.subr.mxu0 0.0
    %1359 = vmatpush1.xpose.msra.mxu0 0.0
    %1360 = vmatprep.subr.mxu0 0.0
    %1361 = vmatpush1.xpose.msra.mxu0 0.0
    %1362 = vmatprep.subr.mxu0 0.0
    %1363 = vmatpush1.xpose.msra.mxu0 0.0
    %1364 = vmatprep.subr.mxu0 0.0
    %1365 = vmatpush1.xpose.msra.mxu0 0.0
    %1366 = vmatprep.subr.mxu0 0.0
    %1367 = vmatpush1.xpose.msra.mxu0 0.0
    %1368 = vmatprep.subr.mxu0 0.0
    %1369 = vmatpush1.xpose.msra.mxu0 0.0
    %1370 = vmatprep.subr.mxu0 0.0
    %1371 = vmatpush1.xpose.msra.mxu0 0.0
    %1372 = vmatprep.subr.mxu0 0.0
    %1373 = vmatpush1.xpose.msra.mxu0 0.0
    %1374 = vmatprep.subr.mxu0 0.0
    %1375 = vmatpush1.xpose.msra.mxu0 0.0
    %1376 = vmatprep.subr.mxu0 0.0
    %1377 = vmatpush1.xpose.msra.mxu0 0.0
    %1378 = vmatprep.subr.mxu0 0.0
    %1379 = vmatpush1.xpose.msra.mxu0 0.0
    %1380 = vmatprep.subr.mxu0 0.0
    %1381 = vmatpush1.xpose.msra.mxu0 0.0
    %1382 = vmatprep.subr.mxu0 0.0
    %1383 = vmatpush1.xpose.msra.mxu0 0.0
    %1384 = vmatprep.subr.mxu0 0.0
    %1385 = vmatpush1.xpose.msra.mxu0 0.0
    %1386 = vmatprep.subr.mxu0 0.0
    %1387 = vmatpush1.xpose.msra.mxu0 0.0
    %1388 = vmatprep.subr.mxu0 0.0
    %1389 = vmatpush1.xpose.msra.mxu0 0.0
    %1390 = vmatprep.subr.mxu0 0.0
    %1391 = vmatpush1.xpose.msra.mxu0 0.0
    %1392 = vmatprep.subr.mxu0 0.0
    %1393 = vmatpush1.xpose.msra.mxu0 0.0
    %1394 = vmatprep.subr.mxu0 0.0
    %1395 = vmatpush1.xpose.msra.mxu0 0.0
    %1396 = vmatprep.mubr.f32.mxu0 0.0
    %1397 = vmatmul.mubr.f32.gmra.mrb[0].mxu0 %v1147
    %v1398 = vpop.f32.mrb[0].mxu0
    %v1399 = vadd.f32 0.0, %v1398
    %v1400 = vpop.f32.mrb[0].mxu0
    %1401 = vdwg.mxu0
    %v1402 = vsel %vm57, %v1399, -inf
    %1403 = vmax.xlane.f32.xlu0 %v1402
    %v1404 = vpop.xlane.xlu0 %1403
    %v1405 = vsub.f32 %v1399, %v1404
    %v1406 = vmul.f32 %v1405, 1.442695
    %v1407 = vpow.pop %v1406
    %v1408 = vsel %vm57, %v1407, 0.0
    %1409 = vadd.xlane.f32.xlu0 %v1408
    %v1410 = vpop.xlane.xlu0 %1409
    %v1411 = vrcp.pop %v1410
    %v1412 = vmul.f32 %v1407, %v1411
    %v1414 = vsel %vm57, %v1412, 0
    %1416 = vmatprep.subr.mxu0 0.0
    %1417 = vmatpush1.msra.mxu0 %v1329
    %1418 = vmatprep.subr.mxu0 0.0
    %1419 = vmatpush1.msra.mxu0 0.0
    %1420 = vmatprep.subr.mxu0 0.0
    %1421 = vmatpush1.msra.mxu0 0.0
    %1422 = vmatprep.subr.mxu0 0.0
    %1423 = vmatpush1.msra.mxu0 0.0
    %1424 = vmatprep.subr.mxu0 0.0
    %1425 = vmatpush1.msra.mxu0 0.0
    %1426 = vmatprep.subr.mxu0 0.0
    %1427 = vmatpush1.msra.mxu0 0.0
    %1428 = vmatprep.subr.mxu0 0.0
    %1429 = vmatpush1.msra.mxu0 0.0
    %1430 = vmatprep.subr.mxu0 0.0
    %1431 = vmatpush1.msra.mxu0 0.0
    %1432 = vmatprep.subr.mxu0 0.0
    %1433 = vmatpush1.msra.mxu0 0.0
    %1434 = vmatprep.subr.mxu0 0.0
    %1435 = vmatpush1.msra.mxu0 0.0
    %1436 = vmatprep.subr.mxu0 0.0
    %1437 = vmatpush1.msra.mxu0 0.0
    %1438 = vmatprep.subr.mxu0 0.0
    %1439 = vmatpush1.msra.mxu0 0.0
    %1440 = vmatprep.subr.mxu0 0.0
    %1441 = vmatpush1.msra.mxu0 0.0
    %1442 = vmatprep.subr.mxu0 0.0
    %1443 = vmatpush1.msra.mxu0 0.0
    %1444 = vmatprep.subr.mxu0 0.0
    %1445 = vmatpush1.msra.mxu0 0.0
    %1446 = vmatprep.subr.mxu0 0.0
    %1447 = vmatpush1.msra.mxu0 0.0
    %1448 = vmatprep.subr.mxu0 0.0
    %1449 = vmatpush1.msra.mxu0 0.0
    %1450 = vmatprep.subr.mxu0 0.0
    %1451 = vmatpush1.msra.mxu0 0.0
    %1452 = vmatprep.subr.mxu0 0.0
    %1453 = vmatpush1.msra.mxu0 0.0
    %1454 = vmatprep.subr.mxu0 0.0
    %1455 = vmatpush1.msra.mxu0 0.0
    %1456 = vmatprep.subr.mxu0 0.0
    %1457 = vmatpush1.msra.mxu0 0.0
    %1458 = vmatprep.subr.mxu0 0.0
    %1459 = vmatpush1.msra.mxu0 0.0
    %1460 = vmatprep.subr.mxu0 0.0
    %1461 = vmatpush1.msra.mxu0 0.0
    %1462 = vmatprep.subr.mxu0 0.0
    %1463 = vmatpush1.msra.mxu0 0.0
    %1464 = vmatprep.subr.mxu0 0.0
    %1465 = vmatpush1.msra.mxu0 0.0
    %1466 = vmatprep.subr.mxu0 0.0
    %1467 = vmatpush1.msra.mxu0 0.0
    %1468 = vmatprep.subr.mxu0 0.0
    %1469 = vmatpush1.msra.mxu0 0.0
    %1470 = vmatprep.subr.mxu0 0.0
    %1471 = vmatpush1.msra.mxu0 0.0
    %1472 = vmatprep.subr.mxu0 0.0
    %1473 = vmatpush1.msra.mxu0 0.0
    %1474 = vmatprep.subr.mxu0 0.0
    %1475 = vmatpush1.msra.mxu0 0.0
    %1476 = vmatprep.subr.mxu0 0.0
    %1477 = vmatpush1.msra.mxu0 0.0
    %1478 = vmatprep.subr.mxu0 0.0
    %1479 = vmatpush1.msra.mxu0 0.0
    %1480 = vmatprep.mubr.f32.mxu0 0.0
    %1481 = vmatmul.mubr.f32.gmra.mrb[0].mxu0 %v1414
    %v1482 = vpop.f32.mrb[0].mxu0
    %v1483 = vadd.f32 0.0, %v1482
    %v1484 = vpop.f32.mrb[0].mxu0
    %1485 = vdwg.mxu0
    %1486 = vst [vmem:[%s3] sm:$0xff] %v1483
    // Predicated region
    $region26: #{encoder_forward.1} parent=1 // pred_check
      _
    $region27: #{encoder_forward.1} parent=1 // pred_check_branch
      %1488 = sbr.rel (0) target = $region29
    $region28: #{encoder_forward.1} parent=1 // pred_region
      _
    $region29: #{encoder_forward.1} parent=1 // pred_fallthru
      _
    // Predicated region
    $region30: #{encoder_forward.1} parent=1 // pred_check
      _
    $region31: #{encoder_forward.1} parent=1 // pred_check_branch
      %1490 = sbr.rel (0) target = $region33
    $region32: #{encoder_forward.1} parent=1 // pred_region
      _
    $region33: #{encoder_forward.1} parent=1 // pred_fallthru
      _
    %1491 = vsyncpa [#allocation3], 1
    %1492 = vsyncpa [#allocation5], 1

</llo_original>
